<compile_context>
chip_gen: v7x
topology: tpu7x:2x2x1
jax: 0.10.0
libtpu: 0.0.40
codegen_flags: <defaults>
</compile_context>

<pallas_src>
import math
import functools

import jax
import jax.numpy as jnp
import numpy as np
from jax.experimental import pallas as pl
from jax.experimental.pallas import tpu as pltpu

# ---------------- small synthetic config ----------------
HIDDEN = 32
N_HEADS = 4
N_KV_HEADS = 2
HEAD_DIM = HIDDEN // N_HEADS          # 8
N_KV_GROUPS = N_HEADS // N_KV_HEADS   # 2
INTERMEDIATE = 64
MAX_POS = 64
ROPE_THETA = 10000.0
RMS_EPS = 1e-6
BATCH = 2
SEQ = 8


# ---------------- fused decoder-layer kernel ----------------
def _decoder_layer_kernel(
    x_ref, cos_ref, sin_ref,
    ln1_ref, wq_ref, bq_ref, wk_ref, bk_ref, wv_ref, bv_ref, wo_ref,
    ln2_ref, wg_ref, wu_ref, wd_ref,
    o_ref,
    *, n_heads, n_kv_heads, head_dim, eps, scale,
):
    f32 = jnp.float32
    x = x_ref[...].astype(f32)            # (S, H)  — also the first residual
    cos = cos_ref[...].astype(f32)        # (S, d)
    sin = sin_ref[...].astype(f32)        # (S, d)

    def rmsnorm(v, w):
        var = jnp.mean(v * v, axis=-1, keepdims=True)
        return v * jax.lax.rsqrt(var + eps) * w

    # ---- attention block: RMSNorm -> QKV(+bias) -> RoPE -> causal GQA -> o_proj (+residual)
    xn = rmsnorm(x, ln1_ref[...].astype(f32))

    q = jnp.dot(xn, wq_ref[...], preferred_element_type=f32) + bq_ref[...].astype(f32)
    k = jnp.dot(xn, wk_ref[...], preferred_element_type=f32) + bk_ref[...].astype(f32)
    v = jnp.dot(xn, wv_ref[...], preferred_element_type=f32) + bv_ref[...].astype(f32)

    S = x.shape[0]
    half = head_dim // 2
    groups = n_heads // n_kv_heads

    row = jax.lax.broadcasted_iota(jnp.int32, (S, S), 0)
    col = jax.lax.broadcasted_iota(jnp.int32, (S, S), 1)
    causal = col <= row

    def rope(xh):  # xh: (S, d);  rotate_half via slice/negate/concat (no MXU, no rot matrix)
        rot = jnp.concatenate([-xh[:, half:], xh[:, :half]], axis=-1)
        return xh * cos + rot * sin

    # RoPE on KV heads once each (shared across the GQA groups).
    k_heads = [rope(k[:, j * head_dim:(j + 1) * head_dim]) for j in range(n_kv_heads)]
    v_heads = [v[:, j * head_dim:(j + 1) * head_dim] for j in range(n_kv_heads)]

    head_outs = []
    for h in range(n_heads):               # static unroll; tiny at toy dims
        kvh = h // groups
        qh = rope(q[:, h * head_dim:(h + 1) * head_dim]) * scale        # (S, d)
        kh = k_heads[kvh]
        vh = v_heads[kvh]
        s = jax.lax.dot_general(qh, kh, (((1,), (1,)), ((), ())),
                                preferred_element_type=f32)             # (S, S)
        s = jnp.where(causal, s, -1e30)
        m = jnp.max(s, axis=-1, keepdims=True)
        p = jnp.exp(s - m)
        l = jnp.sum(p, axis=-1, keepdims=True)
        p = p * pl.reciprocal(l, approx=True)                           # EUP slot, ~free
        head_outs.append(jnp.dot(p, vh, preferred_element_type=f32))    # (S, d)
    attn = jnp.concatenate(head_outs, axis=-1)                          # (S, H) lane-dense

    # o_proj with fused residual add
    h1 = x + jnp.dot(attn, wo_ref[...], preferred_element_type=f32)     # (S, H)

    # ---- MLP block: RMSNorm -> SwiGLU -> down_proj (+residual)
    x2 = rmsnorm(h1, ln2_ref[...].astype(f32))
    g = jnp.dot(x2, wg_ref[...], preferred_element_type=f32)
    u = jnp.dot(x2, wu_ref[...], preferred_element_type=f32)
    act = (g * jax.nn.sigmoid(g)) * u                                    # SiLU(gate) * up
    out = h1 + jnp.dot(act, wd_ref[...], preferred_element_type=f32)

    o_ref[...] = out.astype(o_ref.dtype)


# ---------------- wrapper (grid / BlockSpec plumbing) ----------------
def decoder_layer_forward(hidden_states, w, position_ids, cos_cached, sin_cached):
    """hidden_states: (B, S, H); w: packed (pre-transposed) weights; position_ids: (B, S)."""
    B, S, H = hidden_states.shape
    d = HEAD_DIM
    qd = N_HEADS * d
    kvd = N_KV_HEADS * d
    I = INTERMEDIATE

    # Small XLA gather of the RoPE tables per batch (B, S, d). The tables are then DMA'd once
    # per grid step (one batch) and reused by all heads inside the kernel.
    cos_bs = cos_cached[position_ids]
    sin_bs = sin_cached[position_ids]

    kernel = functools.partial(
        _decoder_layer_kernel,
        n_heads=N_HEADS, n_kv_heads=N_KV_HEADS, head_dim=d,
        eps=RMS_EPS, scale=1.0 / math.sqrt(d),
    )

    sq = pl.Squeezed()
    full = lambda *shape: pl.BlockSpec(shape, lambda b: (0,) * len(shape))  # weights: same block every step

    return pl.pallas_call(
        kernel,
        out_shape=jax.ShapeDtypeStruct((B, S, H), hidden_states.dtype),
        grid=(B,),
        in_specs=[
            pl.BlockSpec((sq, S, H), lambda b: (b, 0, 0)),   # x
            pl.BlockSpec((sq, S, d), lambda b: (b, 0, 0)),   # cos
            pl.BlockSpec((sq, S, d), lambda b: (b, 0, 0)),   # sin
            full(1, H),                                      # input_layernorm weight
            full(H, qd), full(1, qd),                        # wq, bq
            full(H, kvd), full(1, kvd),                      # wk, bk
            full(H, kvd), full(1, kvd),                      # wv, bv
            full(qd, H),                                     # wo
            full(1, H),                                      # post_attention_layernorm weight
            full(H, I), full(H, I), full(I, H),              # gate, up, down
        ],
        out_specs=pl.BlockSpec((sq, S, H), lambda b: (b, 0, 0)),
        compiler_params=pltpu.CompilerParams(
            dimension_semantics=("parallel",)),              # batch steps independent -> v7x 2-TC
    )(hidden_states, cos_bs, sin_bs,
      w["ln1"], w["wq"], w["bq"], w["wk"], w["bk"], w["wv"], w["bv"], w["wo"],
      w["ln2"], w["wg"], w["wu"], w["wd"])


# ---------------- parameter / cache setup ----------------
def rope_cache(max_pos, dim, theta):
    inv_freq = 1.0 / (theta ** (jnp.arange(0, dim, 2, dtype=jnp.float32) / dim))
    t = jnp.arange(max_pos, dtype=jnp.float32)
    freqs = jnp.einsum("i,j->ij", t, inv_freq)
    emb = jnp.concatenate([freqs, freqs], axis=-1)
    return jnp.cos(emb), jnp.sin(emb)                          # (max_pos, dim) each


def make_params(key):
    """PyTorch-convention parameters: Linear weights are (out_features, in_features)."""
    ks = jax.random.split(key, 12)
    std = 0.05
    f32 = jnp.float32
    p = {}
    p["input_ln_w"] = 1.0 + 0.1 * jax.random.normal(ks[0], (HIDDEN,), f32)
    p["q_w"] = std * jax.random.normal(ks[1], (N_HEADS * HEAD_DIM, HIDDEN), f32)
    p["q_b"] = std * jax.random.normal(ks[2], (N_HEADS * HEAD_DIM,), f32)
    p["k_w"] = std * jax.random.normal(ks[3], (N_KV_HEADS * HEAD_DIM, HIDDEN), f32)
    p["k_b"] = std * jax.random.normal(ks[4], (N_KV_HEADS * HEAD_DIM,), f32)
    p["v_w"] = std * jax.random.normal(ks[5], (N_KV_HEADS * HEAD_DIM, HIDDEN), f32)
    p["v_b"] = std * jax.random.normal(ks[6], (N_KV_HEADS * HEAD_DIM,), f32)
    p["o_w"] = std * jax.random.normal(ks[7], (HIDDEN, N_HEADS * HEAD_DIM), f32)
    p["gate_w"] = std * jax.random.normal(ks[8], (INTERMEDIATE, HIDDEN), f32)
    p["up_w"] = std * jax.random.normal(ks[9], (INTERMEDIATE, HIDDEN), f32)
    p["down_w"] = std * jax.random.normal(ks[10], (HIDDEN, INTERMEDIATE), f32)
    p["post_ln_w"] = 1.0 + 0.1 * jax.random.normal(ks[11], (HIDDEN,), f32)
    return p


def pack_layer_weights(p):
    """One-time layout prep: transpose Linear weights to (in, out), reshape 1-D vectors to (1, N)."""
    return {
        "ln1": p["input_ln_w"].reshape(1, HIDDEN),
        "wq": jnp.asarray(p["q_w"].T), "bq": p["q_b"].reshape(1, -1),
        "wk": jnp.asarray(p["k_w"].T), "bk": p["k_b"].reshape(1, -1),
        "wv": jnp.asarray(p["v_w"].T), "bv": p["v_b"].reshape(1, -1),
        "wo": jnp.asarray(p["o_w"].T),
        "ln2": p["post_ln_w"].reshape(1, HIDDEN),
        "wg": jnp.asarray(p["gate_w"].T),
        "wu": jnp.asarray(p["up_w"].T),
        "wd": jnp.asarray(p["down_w"].T),
    }


# ---------------- pure-JAX reference (for sanity check) ----------------
def reference_forward(hidden_states, params, position_ids, cos_cached, sin_cached):
    hi = jax.lax.Precision.HIGHEST

    def rmsnorm_ref(x, w):
        var = jnp.mean(x.astype(jnp.float32) ** 2, axis=-1, keepdims=True)
        return (x * jax.lax.rsqrt(var + RMS_EPS)) * w

    def rope_ref(x, cos, sin):
        half = HEAD_DIM // 2
        rot = jnp.concatenate([-x[..., half:], x[..., :half]], axis=-1)
        return x * cos + rot * sin

    B, S, H = hidden_states.shape
    residual = hidden_states
    x = rmsnorm_ref(hidden_states, params["input_ln_w"])

    q = jnp.dot(x, params["q_w"].T, precision=hi) + params["q_b"]
    k = jnp.dot(x, params["k_w"].T, precision=hi) + params["k_b"]
    v = jnp.dot(x, params["v_w"].T, precision=hi) + params["v_b"]
    q = q.reshape(B, S, N_HEADS, HEAD_DIM).transpose(0, 2, 1, 3)
    k = k.reshape(B, S, N_KV_HEADS, HEAD_DIM).transpose(0, 2, 1, 3)
    v = v.reshape(B, S, N_KV_HEADS, HEAD_DIM).transpose(0, 2, 1, 3)

    cos = cos_cached[position_ids][:, None, :, :]
    sin = sin_cached[position_ids][:, None, :, :]
    q = rope_ref(q, cos, sin)
    k = rope_ref(k, cos, sin)

    k = jnp.repeat(k, N_KV_GROUPS, axis=1)
    v = jnp.repeat(v, N_KV_GROUPS, axis=1)
    s = jnp.einsum("bhqd,bhkd->bhqk", q, k, precision=hi) / math.sqrt(HEAD_DIM)
    mask = jnp.tril(jnp.ones((S, S), bool))
    s = jnp.where(mask[None, None], s, -1e30)
    p = jax.nn.softmax(s, axis=-1)
    o = jnp.einsum("bhqk,bhkd->bhqd", p, v, precision=hi)
    o = o.transpose(0, 2, 1, 3).reshape(B, S, H)
    o = jnp.dot(o, params["o_w"].T, precision=hi)
    hidden_states = residual + o

    residual = hidden_states
    x = rmsnorm_ref(hidden_states, params["post_ln_w"])
    g = jnp.dot(x, params["gate_w"].T, precision=hi)
    u = jnp.dot(x, params["up_w"].T, precision=hi)
    m = jnp.dot(jax.nn.silu(g) * u, params["down_w"].T, precision=hi)
    return residual + m


# ---------------- main ----------------
if __name__ == "__main__":
    key = jax.random.PRNGKey(0)
    k_params, k_x = jax.random.split(key)
    params = make_params(k_params)
    packed = pack_layer_weights(params)        # one-time weight layout prep

    hidden_states = jax.random.normal(k_x, (BATCH, SEQ, HIDDEN), jnp.float32)
    position_ids = jnp.broadcast_to(
        jnp.arange(SEQ, dtype=jnp.int32)[None, :], (BATCH, SEQ))

    cos_cached, sin_cached = rope_cache(MAX_POS, HEAD_DIM, ROPE_THETA)

    out = decoder_layer_forward(hidden_states, packed, position_ids, cos_cached, sin_cached)
    out = jax.block_until_ready(out)

    ref = reference_forward(hidden_states, params, position_ids, cos_cached, sin_cached)
    np.testing.assert_allclose(np.asarray(out), np.asarray(ref), rtol=1e-2, atol=1e-2)
    assert np.all(np.isfinite(np.asarray(out)))

    print("KERNEL_OK")
</pallas_src>

<mosaic_0001>
module attributes {stable_mosaic.version = 11 : i64} {
  func.func @_decoder_layer_kernel(%arg0: i32, %arg1: memref<1x8x32xf32, #tpu.memory_space<vmem>>, %arg2: memref<1x8x8xf32, #tpu.memory_space<vmem>>, %arg3: memref<1x8x8xf32, #tpu.memory_space<vmem>>, %arg4: memref<1x32xf32, #tpu.memory_space<vmem>>, %arg5: memref<32x32xf32, #tpu.memory_space<vmem>>, %arg6: memref<1x32xf32, #tpu.memory_space<vmem>>, %arg7: memref<32x16xf32, #tpu.memory_space<vmem>>, %arg8: memref<1x16xf32, #tpu.memory_space<vmem>>, %arg9: memref<32x16xf32, #tpu.memory_space<vmem>>, %arg10: memref<1x16xf32, #tpu.memory_space<vmem>>, %arg11: memref<32x32xf32, #tpu.memory_space<vmem>>, %arg12: memref<1x32xf32, #tpu.memory_space<vmem>>, %arg13: memref<32x64xf32, #tpu.memory_space<vmem>>, %arg14: memref<32x64xf32, #tpu.memory_space<vmem>>, %arg15: memref<64x32xf32, #tpu.memory_space<vmem>>, %arg16: memref<1x8x32xf32, #tpu.memory_space<vmem>>) attributes {dimension_semantics = [#tpu.dimension_semantics<parallel>], iteration_bounds = array<i64: 2>, scalar_prefetch = 0 : i64, scratch_operands = 0 : i64, tpu.core_type = #tpu.core_type<tc>, window_params = [{transform_indices = @transform_0, window_bounds = array<i64: 1, 8, 32>}, {transform_indices = @transform_1, window_bounds = array<i64: 1, 8, 8>}, {transform_indices = @transform_2, window_bounds = array<i64: 1, 8, 8>}, {pipeline_mode = #tpu.pipeline_mode<synchronous>, transform_indices = @transform_3, window_bounds = array<i64: 1, 32>}, {pipeline_mode = #tpu.pipeline_mode<synchronous>, transform_indices = @transform_4, window_bounds = array<i64: 32, 32>}, {pipeline_mode = #tpu.pipeline_mode<synchronous>, transform_indices = @transform_5, window_bounds = array<i64: 1, 32>}, {pipeline_mode = #tpu.pipeline_mode<synchronous>, transform_indices = @transform_6, window_bounds = array<i64: 32, 16>}, {pipeline_mode = #tpu.pipeline_mode<synchronous>, transform_indices = @transform_7, window_bounds = array<i64: 1, 16>}, {pipeline_mode = #tpu.pipeline_mode<synchronous>, transform_indices = @transform_8, window_bounds = array<i64: 32, 16>}, {pipeline_mode = #tpu.pipeline_mode<synchronous>, transform_indices = @transform_9, window_bounds = array<i64: 1, 16>}, {pipeline_mode = #tpu.pipeline_mode<synchronous>, transform_indices = @transform_10, window_bounds = array<i64: 32, 32>}, {pipeline_mode = #tpu.pipeline_mode<synchronous>, transform_indices = @transform_11, window_bounds = array<i64: 1, 32>}, {pipeline_mode = #tpu.pipeline_mode<synchronous>, transform_indices = @transform_12, window_bounds = array<i64: 32, 64>}, {pipeline_mode = #tpu.pipeline_mode<synchronous>, transform_indices = @transform_13, window_bounds = array<i64: 32, 64>}, {pipeline_mode = #tpu.pipeline_mode<synchronous>, transform_indices = @transform_14, window_bounds = array<i64: 64, 32>}, {transform_indices = @transform_15, window_bounds = array<i64: 1, 8, 32>}]} {
    %c0 = arith.constant 0 : index
    %c0_0 = arith.constant 0 : index
    %c0_1 = arith.constant 0 : index
    %0 = vector.load %arg1[%c0, %c0_0, %c0_1] : memref<1x8x32xf32, #tpu.memory_space<vmem>>, vector<1x8x32xf32>
    %1 = vector.shape_cast %0 : vector<1x8x32xf32> to vector<8x32xf32>
    %c0_2 = arith.constant 0 : index
    %c0_3 = arith.constant 0 : index
    %c0_4 = arith.constant 0 : index
    %2 = vector.load %arg2[%c0_2, %c0_3, %c0_4] : memref<1x8x8xf32, #tpu.memory_space<vmem>>, vector<1x8x8xf32>
    %3 = vector.shape_cast %2 : vector<1x8x8xf32> to vector<8x8xf32>
    %c0_5 = arith.constant 0 : index
    %c0_6 = arith.constant 0 : index
    %c0_7 = arith.constant 0 : index
    %4 = vector.load %arg3[%c0_5, %c0_6, %c0_7] : memref<1x8x8xf32, #tpu.memory_space<vmem>>, vector<1x8x8xf32>
    %5 = vector.shape_cast %4 : vector<1x8x8xf32> to vector<8x8xf32>
    %c0_8 = arith.constant 0 : index
    %c0_9 = arith.constant 0 : index
    %6 = vector.load %arg4[%c0_8, %c0_9] : memref<1x32xf32, #tpu.memory_space<vmem>>, vector<1x32xf32>
    %7 = arith.mulf %1, %1 : vector<8x32xf32>
    %cst = arith.constant dense<0.000000e+00> : vector<8xf32>
    %8 = vector.multi_reduction <add>, %7, %cst [1] : vector<8x32xf32> to vector<8xf32>
    %9 = vector.shape_cast %8 : vector<8xf32> to vector<8x1xf32>
    %cst_10 = arith.constant 3.200000e+01 : f32
    %10 = vector.broadcast %cst_10 : f32 to vector<8x1xf32>
    %11 = arith.divf %9, %10 : vector<8x1xf32>
    %cst_11 = arith.constant 9.99999997E-7 : f32
    %12 = vector.broadcast %cst_11 : f32 to vector<8x1xf32>
    %13 = arith.addf %11, %12 : vector<8x1xf32>
    %14 = math.rsqrt %13 : vector<8x1xf32>
    %15 = vector.broadcast %14 : vector<8x1xf32> to vector<8x32xf32>
    %16 = arith.mulf %1, %15 : vector<8x32xf32>
    %17 = vector.broadcast %6 : vector<1x32xf32> to vector<8x32xf32>
    %18 = arith.mulf %16, %17 : vector<8x32xf32>
    %c0_12 = arith.constant 0 : index
    %c0_13 = arith.constant 0 : index
    %19 = vector.load %arg5[%c0_12, %c0_13] : memref<32x32xf32, #tpu.memory_space<vmem>>, vector<32x32xf32>
    %cst_14 = arith.constant dense<0.000000e+00> : vector<8x32xf32>
    %20 = tpu.matmul %18, %19, %cst_14 {dimension_numbers = #tpu.dot_dimension_numbers<[1], [0], [0], [1], [0, 0, 1, 1], [], []>} : vector<8x32xf32>, vector<32x32xf32>, vector<8x32xf32> -> vector<8x32xf32>
    %c0_15 = arith.constant 0 : index
    %c0_16 = arith.constant 0 : index
    %21 = vector.load %arg6[%c0_15, %c0_16] : memref<1x32xf32, #tpu.memory_space<vmem>>, vector<1x32xf32>
    %22 = vector.broadcast %21 : vector<1x32xf32> to vector<8x32xf32>
    %23 = arith.addf %20, %22 : vector<8x32xf32>
    %c0_17 = arith.constant 0 : index
    %c0_18 = arith.constant 0 : index
    %24 = vector.load %arg7[%c0_17, %c0_18] : memref<32x16xf32, #tpu.memory_space<vmem>>, vector<32x16xf32>
    %cst_19 = arith.constant dense<0.000000e+00> : vector<8x16xf32>
    %25 = tpu.matmul %18, %24, %cst_19 {dimension_numbers = #tpu.dot_dimension_numbers<[1], [0], [0], [1], [0, 0, 1, 1], [], []>} : vector<8x32xf32>, vector<32x16xf32>, vector<8x16xf32> -> vector<8x16xf32>
    %c0_20 = arith.constant 0 : index
    %c0_21 = arith.constant 0 : index
    %26 = vector.load %arg8[%c0_20, %c0_21] : memref<1x16xf32, #tpu.memory_space<vmem>>, vector<1x16xf32>
    %27 = vector.broadcast %26 : vector<1x16xf32> to vector<8x16xf32>
    %28 = arith.addf %25, %27 : vector<8x16xf32>
    %c0_22 = arith.constant 0 : index
    %c0_23 = arith.constant 0 : index
    %29 = vector.load %arg9[%c0_22, %c0_23] : memref<32x16xf32, #tpu.memory_space<vmem>>, vector<32x16xf32>
    %cst_24 = arith.constant dense<0.000000e+00> : vector<8x16xf32>
    %30 = tpu.matmul %18, %29, %cst_24 {dimension_numbers = #tpu.dot_dimension_numbers<[1], [0], [0], [1], [0, 0, 1, 1], [], []>} : vector<8x32xf32>, vector<32x16xf32>, vector<8x16xf32> -> vector<8x16xf32>
    %c0_25 = arith.constant 0 : index
    %c0_26 = arith.constant 0 : index
    %31 = vector.load %arg10[%c0_25, %c0_26] : memref<1x16xf32, #tpu.memory_space<vmem>>, vector<1x16xf32>
    %32 = vector.broadcast %31 : vector<1x16xf32> to vector<8x16xf32>
    %33 = arith.addf %30, %32 : vector<8x16xf32>
    %34 = tpu.iota {dimensions = array<i32: 0>} : vector<8x8xi32>
    %35 = tpu.iota {dimensions = array<i32: 1>} : vector<8x8xi32>
    %36 = arith.cmpi sle, %35, %34 : vector<8x8xi32>
    %37 = vector.extract_strided_slice %28 {offsets = [0, 0], sizes = [8, 8], strides = [1, 1]} : vector<8x16xf32> to vector<8x8xf32>
    %38 = vector.extract_strided_slice %37 {offsets = [0, 4], sizes = [8, 4], strides = [1, 1]} : vector<8x8xf32> to vector<8x4xf32>
    %cst_27 = arith.constant 0.000000e+00 : f32
    %39 = vector.broadcast %cst_27 : f32 to vector<8x4xf32>
    %40 = arith.subf %39, %38 : vector<8x4xf32>
    %41 = vector.extract_strided_slice %37 {offsets = [0, 0], sizes = [8, 4], strides = [1, 1]} : vector<8x8xf32> to vector<8x4xf32>
    %42 = tpu.concatenate %40, %41 in 1 : vector<8x4xf32>, vector<8x4xf32> -> vector<8x8xf32>
    %43 = arith.mulf %37, %3 : vector<8x8xf32>
    %44 = arith.mulf %42, %5 : vector<8x8xf32>
    %45 = arith.addf %43, %44 : vector<8x8xf32>
    %46 = vector.extract_strided_slice %28 {offsets = [0, 8], sizes = [8, 8], strides = [1, 1]} : vector<8x16xf32> to vector<8x8xf32>
    %47 = vector.extract_strided_slice %46 {offsets = [0, 4], sizes = [8, 4], strides = [1, 1]} : vector<8x8xf32> to vector<8x4xf32>
    %cst_28 = arith.constant 0.000000e+00 : f32
    %48 = vector.broadcast %cst_28 : f32 to vector<8x4xf32>
    %49 = arith.subf %48, %47 : vector<8x4xf32>
    %50 = vector.extract_strided_slice %46 {offsets = [0, 0], sizes = [8, 4], strides = [1, 1]} : vector<8x8xf32> to vector<8x4xf32>
    %51 = tpu.concatenate %49, %50 in 1 : vector<8x4xf32>, vector<8x4xf32> -> vector<8x8xf32>
    %52 = arith.mulf %46, %3 : vector<8x8xf32>
    %53 = arith.mulf %51, %5 : vector<8x8xf32>
    %54 = arith.addf %52, %53 : vector<8x8xf32>
    %55 = vector.extract_strided_slice %33 {offsets = [0, 0], sizes = [8, 8], strides = [1, 1]} : vector<8x16xf32> to vector<8x8xf32>
    %56 = vector.extract_strided_slice %33 {offsets = [0, 8], sizes = [8, 8], strides = [1, 1]} : vector<8x16xf32> to vector<8x8xf32>
    %57 = vector.extract_strided_slice %23 {offsets = [0, 0], sizes = [8, 8], strides = [1, 1]} : vector<8x32xf32> to vector<8x8xf32>
    %58 = vector.extract_strided_slice %57 {offsets = [0, 4], sizes = [8, 4], strides = [1, 1]} : vector<8x8xf32> to vector<8x4xf32>
    %cst_29 = arith.constant 0.000000e+00 : f32
    %59 = vector.broadcast %cst_29 : f32 to vector<8x4xf32>
    %60 = arith.subf %59, %58 : vector<8x4xf32>
    %61 = vector.extract_strided_slice %57 {offsets = [0, 0], sizes = [8, 4], strides = [1, 1]} : vector<8x8xf32> to vector<8x4xf32>
    %62 = tpu.concatenate %60, %61 in 1 : vector<8x4xf32>, vector<8x4xf32> -> vector<8x8xf32>
    %63 = arith.mulf %57, %3 : vector<8x8xf32>
    %64 = arith.mulf %62, %5 : vector<8x8xf32>
    %65 = arith.addf %63, %64 : vector<8x8xf32>
    %cst_30 = arith.constant 0.353553385 : f32
    %66 = vector.broadcast %cst_30 : f32 to vector<8x8xf32>
    %67 = arith.mulf %65, %66 : vector<8x8xf32>
    %cst_31 = arith.constant dense<0.000000e+00> : vector<8x8xf32>
    %68 = tpu.matmul %67, %45, %cst_31 {dimension_numbers = #tpu.dot_dimension_numbers<[1], [1], [0], [0], [0, 0, 1, 0], [], []>} : vector<8x8xf32>, vector<8x8xf32>, vector<8x8xf32> -> vector<8x8xf32>
    %cst_32 = arith.constant -1.000000e+30 : f32
    %69 = vector.broadcast %cst_32 : f32 to vector<8x8xf32>
    %70 = arith.select %36, %68, %69 : vector<8x8xi1>, vector<8x8xf32>
    %cst_33 = arith.constant dense<0xFF800000> : vector<8xf32>
    %71 = vector.multi_reduction <maximumf>, %70, %cst_33 [1] : vector<8x8xf32> to vector<8xf32>
    %72 = vector.shape_cast %71 : vector<8xf32> to vector<8x1xf32>
    %73 = vector.broadcast %72 : vector<8x1xf32> to vector<8x8xf32>
    %74 = arith.subf %70, %73 : vector<8x8xf32>
    %75 = math.exp %74 : vector<8x8xf32>
    %cst_34 = arith.constant dense<0.000000e+00> : vector<8xf32>
    %76 = vector.multi_reduction <add>, %75, %cst_34 [1] : vector<8x8xf32> to vector<8xf32>
    %77 = vector.shape_cast %76 : vector<8xf32> to vector<8x1xf32>
    %78 = tpu.reciprocal %77 {approx = true} : vector<8x1xf32> -> vector<8x1xf32>
    %79 = vector.broadcast %78 : vector<8x1xf32> to vector<8x8xf32>
    %80 = arith.mulf %75, %79 : vector<8x8xf32>
    %cst_35 = arith.constant dense<0.000000e+00> : vector<8x8xf32>
    %81 = tpu.matmul %80, %55, %cst_35 {dimension_numbers = #tpu.dot_dimension_numbers<[1], [0], [0], [1], [0, 0, 1, 1], [], []>} : vector<8x8xf32>, vector<8x8xf32>, vector<8x8xf32> -> vector<8x8xf32>
    %82 = vector.extract_strided_slice %23 {offsets = [0, 8], sizes = [8, 8], strides = [1, 1]} : vector<8x32xf32> to vector<8x8xf32>
    %83 = vector.extract_strided_slice %82 {offsets = [0, 4], sizes = [8, 4], strides = [1, 1]} : vector<8x8xf32> to vector<8x4xf32>
    %cst_36 = arith.constant 0.000000e+00 : f32
    %84 = vector.broadcast %cst_36 : f32 to vector<8x4xf32>
    %85 = arith.subf %84, %83 : vector<8x4xf32>
    %86 = vector.extract_strided_slice %82 {offsets = [0, 0], sizes = [8, 4], strides = [1, 1]} : vector<8x8xf32> to vector<8x4xf32>
    %87 = tpu.concatenate %85, %86 in 1 : vector<8x4xf32>, vector<8x4xf32> -> vector<8x8xf32>
    %88 = arith.mulf %82, %3 : vector<8x8xf32>
    %89 = arith.mulf %87, %5 : vector<8x8xf32>
    %90 = arith.addf %88, %89 : vector<8x8xf32>
    %cst_37 = arith.constant 0.353553385 : f32
    %91 = vector.broadcast %cst_37 : f32 to vector<8x8xf32>
    %92 = arith.mulf %90, %91 : vector<8x8xf32>
    %cst_38 = arith.constant dense<0.000000e+00> : vector<8x8xf32>
    %93 = tpu.matmul %92, %45, %cst_38 {dimension_numbers = #tpu.dot_dimension_numbers<[1], [1], [0], [0], [0, 0, 1, 0], [], []>} : vector<8x8xf32>, vector<8x8xf32>, vector<8x8xf32> -> vector<8x8xf32>
    %cst_39 = arith.constant -1.000000e+30 : f32
    %94 = vector.broadcast %cst_39 : f32 to vector<8x8xf32>
    %95 = arith.select %36, %93, %94 : vector<8x8xi1>, vector<8x8xf32>
    %cst_40 = arith.constant dense<0xFF800000> : vector<8xf32>
    %96 = vector.multi_reduction <maximumf>, %95, %cst_40 [1] : vector<8x8xf32> to vector<8xf32>
    %97 = vector.shape_cast %96 : vector<8xf32> to vector<8x1xf32>
    %98 = vector.broadcast %97 : vector<8x1xf32> to vector<8x8xf32>
    %99 = arith.subf %95, %98 : vector<8x8xf32>
    %100 = math.exp %99 : vector<8x8xf32>
    %cst_41 = arith.constant dense<0.000000e+00> : vector<8xf32>
    %101 = vector.multi_reduction <add>, %100, %cst_41 [1] : vector<8x8xf32> to vector<8xf32>
    %102 = vector.shape_cast %101 : vector<8xf32> to vector<8x1xf32>
    %103 = tpu.reciprocal %102 {approx = true} : vector<8x1xf32> -> vector<8x1xf32>
    %104 = vector.broadcast %103 : vector<8x1xf32> to vector<8x8xf32>
    %105 = arith.mulf %100, %104 : vector<8x8xf32>
    %cst_42 = arith.constant dense<0.000000e+00> : vector<8x8xf32>
    %106 = tpu.matmul %105, %55, %cst_42 {dimension_numbers = #tpu.dot_dimension_numbers<[1], [0], [0], [1], [0, 0, 1, 1], [], []>} : vector<8x8xf32>, vector<8x8xf32>, vector<8x8xf32> -> vector<8x8xf32>
    %107 = vector.extract_strided_slice %23 {offsets = [0, 16], sizes = [8, 8], strides = [1, 1]} : vector<8x32xf32> to vector<8x8xf32>
    %108 = vector.extract_strided_slice %107 {offsets = [0, 4], sizes = [8, 4], strides = [1, 1]} : vector<8x8xf32> to vector<8x4xf32>
    %cst_43 = arith.constant 0.000000e+00 : f32
    %109 = vector.broadcast %cst_43 : f32 to vector<8x4xf32>
    %110 = arith.subf %109, %108 : vector<8x4xf32>
    %111 = vector.extract_strided_slice %107 {offsets = [0, 0], sizes = [8, 4], strides = [1, 1]} : vector<8x8xf32> to vector<8x4xf32>
    %112 = tpu.concatenate %110, %111 in 1 : vector<8x4xf32>, vector<8x4xf32> -> vector<8x8xf32>
    %113 = arith.mulf %107, %3 : vector<8x8xf32>
    %114 = arith.mulf %112, %5 : vector<8x8xf32>
    %115 = arith.addf %113, %114 : vector<8x8xf32>
    %cst_44 = arith.constant 0.353553385 : f32
    %116 = vector.broadcast %cst_44 : f32 to vector<8x8xf32>
    %117 = arith.mulf %115, %116 : vector<8x8xf32>
    %cst_45 = arith.constant dense<0.000000e+00> : vector<8x8xf32>
    %118 = tpu.matmul %117, %54, %cst_45 {dimension_numbers = #tpu.dot_dimension_numbers<[1], [1], [0], [0], [0, 0, 1, 0], [], []>} : vector<8x8xf32>, vector<8x8xf32>, vector<8x8xf32> -> vector<8x8xf32>
    %cst_46 = arith.constant -1.000000e+30 : f32
    %119 = vector.broadcast %cst_46 : f32 to vector<8x8xf32>
    %120 = arith.select %36, %118, %119 : vector<8x8xi1>, vector<8x8xf32>
    %cst_47 = arith.constant dense<0xFF800000> : vector<8xf32>
    %121 = vector.multi_reduction <maximumf>, %120, %cst_47 [1] : vector<8x8xf32> to vector<8xf32>
    %122 = vector.shape_cast %121 : vector<8xf32> to vector<8x1xf32>
    %123 = vector.broadcast %122 : vector<8x1xf32> to vector<8x8xf32>
    %124 = arith.subf %120, %123 : vector<8x8xf32>
    %125 = math.exp %124 : vector<8x8xf32>
    %cst_48 = arith.constant dense<0.000000e+00> : vector<8xf32>
    %126 = vector.multi_reduction <add>, %125, %cst_48 [1] : vector<8x8xf32> to vector<8xf32>
    %127 = vector.shape_cast %126 : vector<8xf32> to vector<8x1xf32>
    %128 = tpu.reciprocal %127 {approx = true} : vector<8x1xf32> -> vector<8x1xf32>
    %129 = vector.broadcast %128 : vector<8x1xf32> to vector<8x8xf32>
    %130 = arith.mulf %125, %129 : vector<8x8xf32>
    %cst_49 = arith.constant dense<0.000000e+00> : vector<8x8xf32>
    %131 = tpu.matmul %130, %56, %cst_49 {dimension_numbers = #tpu.dot_dimension_numbers<[1], [0], [0], [1], [0, 0, 1, 1], [], []>} : vector<8x8xf32>, vector<8x8xf32>, vector<8x8xf32> -> vector<8x8xf32>
    %132 = vector.extract_strided_slice %23 {offsets = [0, 24], sizes = [8, 8], strides = [1, 1]} : vector<8x32xf32> to vector<8x8xf32>
    %133 = vector.extract_strided_slice %132 {offsets = [0, 4], sizes = [8, 4], strides = [1, 1]} : vector<8x8xf32> to vector<8x4xf32>
    %cst_50 = arith.constant 0.000000e+00 : f32
    %134 = vector.broadcast %cst_50 : f32 to vector<8x4xf32>
    %135 = arith.subf %134, %133 : vector<8x4xf32>
    %136 = vector.extract_strided_slice %132 {offsets = [0, 0], sizes = [8, 4], strides = [1, 1]} : vector<8x8xf32> to vector<8x4xf32>
    %137 = tpu.concatenate %135, %136 in 1 : vector<8x4xf32>, vector<8x4xf32> -> vector<8x8xf32>
    %138 = arith.mulf %132, %3 : vector<8x8xf32>
    %139 = arith.mulf %137, %5 : vector<8x8xf32>
    %140 = arith.addf %138, %139 : vector<8x8xf32>
    %cst_51 = arith.constant 0.353553385 : f32
    %141 = vector.broadcast %cst_51 : f32 to vector<8x8xf32>
    %142 = arith.mulf %140, %141 : vector<8x8xf32>
    %cst_52 = arith.constant dense<0.000000e+00> : vector<8x8xf32>
    %143 = tpu.matmul %142, %54, %cst_52 {dimension_numbers = #tpu.dot_dimension_numbers<[1], [1], [0], [0], [0, 0, 1, 0], [], []>} : vector<8x8xf32>, vector<8x8xf32>, vector<8x8xf32> -> vector<8x8xf32>
    %cst_53 = arith.constant -1.000000e+30 : f32
    %144 = vector.broadcast %cst_53 : f32 to vector<8x8xf32>
    %145 = arith.select %36, %143, %144 : vector<8x8xi1>, vector<8x8xf32>
    %cst_54 = arith.constant dense<0xFF800000> : vector<8xf32>
    %146 = vector.multi_reduction <maximumf>, %145, %cst_54 [1] : vector<8x8xf32> to vector<8xf32>
    %147 = vector.shape_cast %146 : vector<8xf32> to vector<8x1xf32>
    %148 = vector.broadcast %147 : vector<8x1xf32> to vector<8x8xf32>
    %149 = arith.subf %145, %148 : vector<8x8xf32>
    %150 = math.exp %149 : vector<8x8xf32>
    %cst_55 = arith.constant dense<0.000000e+00> : vector<8xf32>
    %151 = vector.multi_reduction <add>, %150, %cst_55 [1] : vector<8x8xf32> to vector<8xf32>
    %152 = vector.shape_cast %151 : vector<8xf32> to vector<8x1xf32>
    %153 = tpu.reciprocal %152 {approx = true} : vector<8x1xf32> -> vector<8x1xf32>
    %154 = vector.broadcast %153 : vector<8x1xf32> to vector<8x8xf32>
    %155 = arith.mulf %150, %154 : vector<8x8xf32>
    %cst_56 = arith.constant dense<0.000000e+00> : vector<8x8xf32>
    %156 = tpu.matmul %155, %56, %cst_56 {dimension_numbers = #tpu.dot_dimension_numbers<[1], [0], [0], [1], [0, 0, 1, 1], [], []>} : vector<8x8xf32>, vector<8x8xf32>, vector<8x8xf32> -> vector<8x8xf32>
    %157 = tpu.concatenate %81, %106, %131, %156 in 1 : vector<8x8xf32>, vector<8x8xf32>, vector<8x8xf32>, vector<8x8xf32> -> vector<8x32xf32>
    %c0_57 = arith.constant 0 : index
    %c0_58 = arith.constant 0 : index
    %158 = vector.load %arg11[%c0_57, %c0_58] : memref<32x32xf32, #tpu.memory_space<vmem>>, vector<32x32xf32>
    %cst_59 = arith.constant dense<0.000000e+00> : vector<8x32xf32>
    %159 = tpu.matmul %157, %158, %cst_59 {dimension_numbers = #tpu.dot_dimension_numbers<[1], [0], [0], [1], [0, 0, 1, 1], [], []>} : vector<8x32xf32>, vector<32x32xf32>, vector<8x32xf32> -> vector<8x32xf32>
    %160 = arith.addf %1, %159 : vector<8x32xf32>
    %c0_60 = arith.constant 0 : index
    %c0_61 = arith.constant 0 : index
    %161 = vector.load %arg12[%c0_60, %c0_61] : memref<1x32xf32, #tpu.memory_space<vmem>>, vector<1x32xf32>
    %162 = arith.mulf %160, %160 : vector<8x32xf32>
    %cst_62 = arith.constant dense<0.000000e+00> : vector<8xf32>
    %163 = vector.multi_reduction <add>, %162, %cst_62 [1] : vector<8x32xf32> to vector<8xf32>
    %164 = vector.shape_cast %163 : vector<8xf32> to vector<8x1xf32>
    %cst_63 = arith.constant 3.200000e+01 : f32
    %165 = vector.broadcast %cst_63 : f32 to vector<8x1xf32>
    %166 = arith.divf %164, %165 : vector<8x1xf32>
    %cst_64 = arith.constant 9.99999997E-7 : f32
    %167 = vector.broadcast %cst_64 : f32 to vector<8x1xf32>
    %168 = arith.addf %166, %167 : vector<8x1xf32>
    %169 = math.rsqrt %168 : vector<8x1xf32>
    %170 = vector.broadcast %169 : vector<8x1xf32> to vector<8x32xf32>
    %171 = arith.mulf %160, %170 : vector<8x32xf32>
    %172 = vector.broadcast %161 : vector<1x32xf32> to vector<8x32xf32>
    %173 = arith.mulf %171, %172 : vector<8x32xf32>
    %c0_65 = arith.constant 0 : index
    %c0_66 = arith.constant 0 : index
    %174 = vector.load %arg13[%c0_65, %c0_66] : memref<32x64xf32, #tpu.memory_space<vmem>>, vector<32x64xf32>
    %cst_67 = arith.constant dense<0.000000e+00> : vector<8x64xf32>
    %175 = tpu.matmul %173, %174, %cst_67 {dimension_numbers = #tpu.dot_dimension_numbers<[1], [0], [0], [1], [0, 0, 1, 1], [], []>} : vector<8x32xf32>, vector<32x64xf32>, vector<8x64xf32> -> vector<8x64xf32>
    %c0_68 = arith.constant 0 : index
    %c0_69 = arith.constant 0 : index
    %176 = vector.load %arg14[%c0_68, %c0_69] : memref<32x64xf32, #tpu.memory_space<vmem>>, vector<32x64xf32>
    %cst_70 = arith.constant dense<0.000000e+00> : vector<8x64xf32>
    %177 = tpu.matmul %173, %176, %cst_70 {dimension_numbers = #tpu.dot_dimension_numbers<[1], [0], [0], [1], [0, 0, 1, 1], [], []>} : vector<8x32xf32>, vector<32x64xf32>, vector<8x64xf32> -> vector<8x64xf32>
    %178 = arith.negf %175 : vector<8x64xf32>
    %179 = math.exp %178 : vector<8x64xf32>
    %cst_71 = arith.constant 1.000000e+00 : f32
    %180 = vector.broadcast %cst_71 : f32 to vector<8x64xf32>
    %181 = arith.addf %180, %179 : vector<8x64xf32>
    %182 = arith.divf %180, %181 : vector<8x64xf32>
    %183 = arith.mulf %175, %182 : vector<8x64xf32>
    %184 = arith.mulf %183, %177 : vector<8x64xf32>
    %c0_72 = arith.constant 0 : index
    %c0_73 = arith.constant 0 : index
    %185 = vector.load %arg15[%c0_72, %c0_73] : memref<64x32xf32, #tpu.memory_space<vmem>>, vector<64x32xf32>
    %cst_74 = arith.constant dense<0.000000e+00> : vector<8x32xf32>
    %186 = tpu.matmul %184, %185, %cst_74 {dimension_numbers = #tpu.dot_dimension_numbers<[1], [0], [0], [1], [0, 0, 1, 1], [], []>} : vector<8x64xf32>, vector<64x32xf32>, vector<8x32xf32> -> vector<8x32xf32>
    %187 = arith.addf %160, %186 : vector<8x32xf32>
    %c0_75 = arith.constant 0 : index
    %c0_76 = arith.constant 0 : index
    %c0_77 = arith.constant 0 : index
    %188 = vector.load %arg16[%c0_75, %c0_76, %c0_77] : memref<1x8x32xf32, #tpu.memory_space<vmem>>, vector<1x8x32xf32>
    %189 = vector.shape_cast %188 : vector<1x8x32xf32> to vector<8x32xf32>
    %190 = vector.shape_cast %187 : vector<8x32xf32> to vector<1x8x32xf32>
    tpu.vector_store %arg16[%c0_75, %c0_76, %c0_77], %190 {strides = array<i32>} : memref<1x8x32xf32, #tpu.memory_space<vmem>>, vector<1x8x32xf32>,
    return
  }
  func.func @transform_0(%arg0: i32) -> (i32, i32, i32) {
    %c0_i32 = arith.constant 0 : i32
    %c0_i32_0 = arith.constant 0 : i32
    %c0_i32_1 = arith.constant 0 : i32
    return %arg0, %c0_i32, %c0_i32_0 : i32, i32, i32
  }
  func.func @transform_1(%arg0: i32) -> (i32, i32, i32) {
    %c0_i32 = arith.constant 0 : i32
    %c0_i32_0 = arith.constant 0 : i32
    %c0_i32_1 = arith.constant 0 : i32
    return %arg0, %c0_i32, %c0_i32_0 : i32, i32, i32
  }
  func.func @transform_2(%arg0: i32) -> (i32, i32, i32) {
    %c0_i32 = arith.constant 0 : i32
    %c0_i32_0 = arith.constant 0 : i32
    %c0_i32_1 = arith.constant 0 : i32
    return %arg0, %c0_i32, %c0_i32_0 : i32, i32, i32
  }
  func.func @transform_3(%arg0: i32) -> (i32, i32) {
    %c0_i32 = arith.constant 0 : i32
    %c0_i32_0 = arith.constant 0 : i32
    %c0_i32_1 = arith.constant 0 : i32
    return %c0_i32, %c0_i32_0 : i32, i32
  }
  func.func @transform_4(%arg0: i32) -> (i32, i32) {
    %c0_i32 = arith.constant 0 : i32
    %c0_i32_0 = arith.constant 0 : i32
    %c0_i32_1 = arith.constant 0 : i32
    return %c0_i32, %c0_i32_0 : i32, i32
  }
  func.func @transform_5(%arg0: i32) -> (i32, i32) {
    %c0_i32 = arith.constant 0 : i32
    %c0_i32_0 = arith.constant 0 : i32
    %c0_i32_1 = arith.constant 0 : i32
    return %c0_i32, %c0_i32_0 : i32, i32
  }
  func.func @transform_6(%arg0: i32) -> (i32, i32) {
    %c0_i32 = arith.constant 0 : i32
    %c0_i32_0 = arith.constant 0 : i32
    %c0_i32_1 = arith.constant 0 : i32
    return %c0_i32, %c0_i32_0 : i32, i32
  }
  func.func @transform_7(%arg0: i32) -> (i32, i32) {
    %c0_i32 = arith.constant 0 : i32
    %c0_i32_0 = arith.constant 0 : i32
    %c0_i32_1 = arith.constant 0 : i32
    return %c0_i32, %c0_i32_0 : i32, i32
  }
  func.func @transform_8(%arg0: i32) -> (i32, i32) {
    %c0_i32 = arith.constant 0 : i32
    %c0_i32_0 = arith.constant 0 : i32
    %c0_i32_1 = arith.constant 0 : i32
    return %c0_i32, %c0_i32_0 : i32, i32
  }
  func.func @transform_9(%arg0: i32) -> (i32, i32) {
    %c0_i32 = arith.constant 0 : i32
    %c0_i32_0 = arith.constant 0 : i32
    %c0_i32_1 = arith.constant 0 : i32
    return %c0_i32, %c0_i32_0 : i32, i32
  }
  func.func @transform_10(%arg0: i32) -> (i32, i32) {
    %c0_i32 = arith.constant 0 : i32
    %c0_i32_0 = arith.constant 0 : i32
    %c0_i32_1 = arith.constant 0 : i32
    return %c0_i32, %c0_i32_0 : i32, i32
  }
  func.func @transform_11(%arg0: i32) -> (i32, i32) {
    %c0_i32 = arith.constant 0 : i32
    %c0_i32_0 = arith.constant 0 : i32
    %c0_i32_1 = arith.constant 0 : i32
    return %c0_i32, %c0_i32_0 : i32, i32
  }
  func.func @transform_12(%arg0: i32) -> (i32, i32) {
    %c0_i32 = arith.constant 0 : i32
    %c0_i32_0 = arith.constant 0 : i32
    %c0_i32_1 = arith.constant 0 : i32
    return %c0_i32, %c0_i32_0 : i32, i32
  }
  func.func @transform_13(%arg0: i32) -> (i32, i32) {
    %c0_i32 = arith.constant 0 : i32
    %c0_i32_0 = arith.constant 0 : i32
    %c0_i32_1 = arith.constant 0 : i32
    return %c0_i32, %c0_i32_0 : i32, i32
  }
  func.func @transform_14(%arg0: i32) -> (i32, i32) {
    %c0_i32 = arith.constant 0 : i32
    %c0_i32_0 = arith.constant 0 : i32
    %c0_i32_1 = arith.constant 0 : i32
    return %c0_i32, %c0_i32_0 : i32, i32
  }
  func.func @transform_15(%arg0: i32) -> (i32, i32, i32) {
    %c0_i32 = arith.constant 0 : i32
    %c0_i32_0 = arith.constant 0 : i32
    %c0_i32_1 = arith.constant 0 : i32
    return %arg0, %c0_i32, %c0_i32_0 : i32, i32, i32
  }
}

</mosaic_0001>

<llo_original>
// kernel: tpu_custom_call.1
$region0: #{tpu_custom_call.1}
  #allocation0 [shape = 'u32[]', space=smem, size = 0x4, offset = 0x4, fixed_abs, tag = 'smem constant byte address 0x4 - core index']
  #allocation1 [shape = 'u32[144,128]{1,0:T(1,128)}', space=vmem, size = 0x12000, scoped, tag = 'internal scratch']
  %s0 = inlined_call_operand.vmem [shape: f32[2,8,32], index: 0, kind: input, shape index: {}]
  %s1 = inlined_call_operand.hbm [shape: f32[2,8,8], index: 1, kind: input, shape index: {}]
  %s2 = inlined_call_operand.hbm [shape: f32[2,8,8], index: 2, kind: input, shape index: {}]
  %s3 = inlined_call_operand.vmem [shape: f32[1,32], index: 3, kind: input, shape index: {}]
  %s4 = inlined_call_operand.vmem [shape: f32[32,32], index: 4, kind: input, shape index: {}]
  %s5 = inlined_call_operand.vmem [shape: f32[1,32], index: 5, kind: input, shape index: {}]
  %s6 = inlined_call_operand.vmem [shape: f32[32,16], index: 6, kind: input, shape index: {}]
  %s7 = inlined_call_operand.vmem [shape: f32[1,16], index: 7, kind: input, shape index: {}]
  %s8 = inlined_call_operand.vmem [shape: f32[32,16], index: 8, kind: input, shape index: {}]
  %s9 = inlined_call_operand.vmem [shape: f32[1,16], index: 9, kind: input, shape index: {}]
  %s10 = inlined_call_operand.vmem [shape: f32[32,32], index: 10, kind: input, shape index: {}]
  %s11 = inlined_call_operand.vmem [shape: f32[1,32], index: 11, kind: input, shape index: {}]
  %s12 = inlined_call_operand.vmem [shape: f32[32,64], index: 12, kind: input, shape index: {}]
  %s13 = inlined_call_operand.vmem [shape: f32[32,64], index: 13, kind: input, shape index: {}]
  %s14 = inlined_call_operand.vmem [shape: f32[64,32], index: 14, kind: input, shape index: {}]
  %s15 = inlined_call_operand.hbm [shape: f32[2,8,32], index: 15, kind: output, shape index: {}]
  %s16 = sld [smem:[#allocation0]]
  $region101: #{tpu_custom_call.1} parent=0
    _
  %s18 = ssub.s32 1, %s16
  %s19 = scalar_select 0, %s18, %s16
  $region1: #{tpu_custom_call.1} parent=0
    #allocation2 [shape = 'u8[8192]{0}', space=vmem, size = 0x2000, scoped, tag = 'input window, operand 1']
    #allocation3 [shape = 's32[2]{0}', space=sflag, size = 0x8, scoped, tag = 'scoped memory for tpu_custom_call.1']
    #allocation4 [shape = 's32[2]{0}', space=sflag, size = 0x8, scoped, tag = 'scoped memory for tpu_custom_call.1']
    #allocation5 [shape = 'u8[8192]{0}', space=vmem, size = 0x2000, scoped, tag = 'input window, operand 2']
    #allocation6 [shape = 's32[2]{0}', space=sflag, size = 0x8, scoped, tag = 'scoped memory for tpu_custom_call.1']
    #allocation7 [shape = 'u8[8192]{0}', space=vmem, size = 0x2000, scoped, tag = 'output window, operand 0']
    %20 = vsyncpa [#allocation3], 0
    %s21 = scalar_lea.sflag [#allocation3], 1
    %22 = vsyncpa %s21, 0
    %23 = vsyncpa [#allocation6], 0
    %s24 = scalar_lea.sflag [#allocation6], 1
    %25 = vsyncpa %s24, 0
    %26 = vsyncpa [#allocation4], 0
    %s27 = scalar_lea.sflag [#allocation4], 1
    %28 = vsyncpa %s27, 0
    loop: start=0, step=1, limit=4
    $region2: #{tpu_custom_call.1} parent=1 // loop_pre_header
      _
    $region3: #{tpu_custom_call.1} parent=1 // loop_header
      %s30 = sphi 0, %s34
      %p31 = scmp.ge.s32.totalorder %s30, 4
      %s40 = sphi 0, %s42
      %s43 = sphi 0, %s40
      %s44 = sphi 0, %s43
      %s60 = sphi 0, %s44
      %s66 = sphi 0, %s68
      %s69 = sphi 0, %s66
      %s70 = sphi 0, %s69
      %s86 = sphi 0, %s70
      %s92 = sphi 0, %s94
      %s95 = sphi 0, %s92
      %s96 = sphi 0, %s95
      %s112 = sphi 0, %s96
      %s116 = sphi 0, %s116
      %s118 = sphi 0, %s116
      %s119 = sphi 0, %s118
      %s133 = sphi 0, %s119
      %s137 = sphi 0, %s137
      %s139 = sphi 0, %s137
      %s140 = sphi 0, %s139
      %s154 = sphi 0, %s140
      %s158 = sphi 0, %s158
      %s160 = sphi 0, %s158
      %s161 = sphi 0, %s160
      %s175 = sphi 0, %s161
      %s179 = sphi 0, %s179
      %s181 = sphi 0, %s179
      %s182 = sphi 0, %s181
      %s196 = sphi 0, %s182
      %s200 = sphi 0, %s200
      %s202 = sphi 0, %s200
      %s203 = sphi 0, %s202
      %s217 = sphi 0, %s203
      %s221 = sphi 0, %s221
      %s223 = sphi 0, %s221
      %s224 = sphi 0, %s223
      %s238 = sphi 0, %s224
      %s242 = sphi 0, %s242
      %s244 = sphi 0, %s242
      %s245 = sphi 0, %s244
      %s259 = sphi 0, %s245
      %s263 = sphi 0, %s263
      %s265 = sphi 0, %s263
      %s266 = sphi 0, %s265
      %s280 = sphi 0, %s266
      %s284 = sphi 0, %s284
      %s286 = sphi 0, %s284
      %s287 = sphi 0, %s286
      %s301 = sphi 0, %s287
      %s305 = sphi 0, %s305
      %s307 = sphi 0, %s305
      %s308 = sphi 0, %s307
      %s322 = sphi 0, %s308
      %s326 = sphi 0, %s326
      %s328 = sphi 0, %s326
      %s329 = sphi 0, %s328
      %s343 = sphi 0, %s329
      %s347 = sphi 0, %s347
      %s349 = sphi 0, %s347
      %s350 = sphi 0, %s349
      %s364 = sphi 0, %s350
      %s370 = sphi 0, %s372
      %s373 = sphi 0, %s370
      %s374 = sphi 0, %s373
      %s390 = sphi 0, %s374
    $region4: #{tpu_custom_call.1} parent=1 // loop_header_branch
      %33 = sbr.rel (%p31) target = $region8
    $region5: #{tpu_custom_call.1} parent=1 // loop_body
      %s35 = ssub.s32 %s30, 1
      %s36 = ssub.s32 %s30, 2
      %s37 = sadd.s32 %s30, 1
      %s38 = ssub.s32 %s30, %s37
      %p39 = scmp.eq.s32.totalorder %s38, 0
      %s41 = sadd.s32 %s40, 1
      %s42 = scalar_select %p39, %s40, %s41
      %p45 = pneg %p39
      %p46 = scmp.eq.s32.totalorder %s30, 1
      %p47 = por %p45, %p46
      %p48 = scmp.ne.s32.totalorder %s40, %s43
      %p49 = scmp.eq.s32.totalorder %s30, 0
      %p50 = por %p48, %p49
      %p51 = scmp.ne.s32.totalorder %s40, %s43
      %p52 = scmp.eq.s32.totalorder %s35, 1
      %p53 = por %p51, %p52
      %p54 = scmp.ne.s32.totalorder %s43, %s44
      %p55 = scmp.eq.s32.totalorder %s35, 0
      %p56 = por %p54, %p55
      %p57 = scmp.ne.s32.totalorder %s43, %s44
      %p58 = scmp.eq.s32.totalorder %s36, 1
      %p59 = por %p57, %p58
      %p61 = scmp.ne.s32.totalorder %s44, %s60
      %p62 = scmp.eq.s32.totalorder %s36, 0
      %p63 = por %p61, %p62
      %s64 = ssub.s32 %s30, %s37
      %p65 = scmp.eq.s32.totalorder %s64, 0
      %s67 = sadd.s32 %s66, 1
      %s68 = scalar_select %p65, %s66, %s67
      %p71 = pneg %p65
      %p72 = scmp.eq.s32.totalorder %s30, 1
      %p73 = por %p71, %p72
      %p74 = scmp.ne.s32.totalorder %s66, %s69
      %p75 = scmp.eq.s32.totalorder %s30, 0
      %p76 = por %p74, %p75
      %p77 = scmp.ne.s32.totalorder %s66, %s69
      %p78 = scmp.eq.s32.totalorder %s35, 1
      %p79 = por %p77, %p78
      %p80 = scmp.ne.s32.totalorder %s69, %s70
      %p81 = scmp.eq.s32.totalorder %s35, 0
      %p82 = por %p80, %p81
      %p83 = scmp.ne.s32.totalorder %s69, %s70
      %p84 = scmp.eq.s32.totalorder %s36, 1
      %p85 = por %p83, %p84
      %p87 = scmp.ne.s32.totalorder %s70, %s86
      %p88 = scmp.eq.s32.totalorder %s36, 0
      %p89 = por %p87, %p88
      %s90 = ssub.s32 %s30, %s37
      %p91 = scmp.eq.s32.totalorder %s90, 0
      %s93 = sadd.s32 %s92, 1
      %s94 = scalar_select %p91, %s92, %s93
      %p97 = pneg %p91
      %p98 = scmp.eq.s32.totalorder %s30, 1
      %p99 = por %p97, %p98
      %p100 = scmp.ne.s32.totalorder %s92, %s95
      %p101 = scmp.eq.s32.totalorder %s30, 0
      %p102 = por %p100, %p101
      %p103 = scmp.ne.s32.totalorder %s92, %s95
      %p104 = scmp.eq.s32.totalorder %s35, 1
      %p105 = por %p103, %p104
      %p106 = scmp.ne.s32.totalorder %s95, %s96
      %p107 = scmp.eq.s32.totalorder %s35, 0
      %p108 = por %p106, %p107
      %p109 = scmp.ne.s32.totalorder %s95, %s96
      %p110 = scmp.eq.s32.totalorder %s36, 1
      %p111 = por %p109, %p110
      %p113 = scmp.ne.s32.totalorder %s96, %s112
      %p114 = scmp.eq.s32.totalorder %s36, 0
      %p115 = por %p113, %p114
      %s117 = sadd.s32 %s116, 1
      %p120 = scmp.eq.s32.totalorder %s30, 1
      %p121 = scmp.ne.s32.totalorder %s116, %s118
      %p122 = scmp.eq.s32.totalorder %s30, 0
      %p123 = por %p121, %p122
      %p124 = scmp.ne.s32.totalorder %s116, %s118
      %p125 = scmp.eq.s32.totalorder %s35, 1
      %p126 = por %p124, %p125
      %p127 = scmp.ne.s32.totalorder %s118, %s119
      %p128 = scmp.eq.s32.totalorder %s35, 0
      %p129 = por %p127, %p128
      %p130 = scmp.ne.s32.totalorder %s118, %s119
      %p131 = scmp.eq.s32.totalorder %s36, 1
      %p132 = por %p130, %p131
      %p134 = scmp.ne.s32.totalorder %s119, %s133
      %p135 = scmp.eq.s32.totalorder %s36, 0
      %p136 = por %p134, %p135
      %s138 = sadd.s32 %s137, 1
      %p141 = scmp.eq.s32.totalorder %s30, 1
      %p142 = scmp.ne.s32.totalorder %s137, %s139
      %p143 = scmp.eq.s32.totalorder %s30, 0
      %p144 = por %p142, %p143
      %p145 = scmp.ne.s32.totalorder %s137, %s139
      %p146 = scmp.eq.s32.totalorder %s35, 1
      %p147 = por %p145, %p146
      %p148 = scmp.ne.s32.totalorder %s139, %s140
      %p149 = scmp.eq.s32.totalorder %s35, 0
      %p150 = por %p148, %p149
      %p151 = scmp.ne.s32.totalorder %s139, %s140
      %p152 = scmp.eq.s32.totalorder %s36, 1
      %p153 = por %p151, %p152
      %p155 = scmp.ne.s32.totalorder %s140, %s154
      %p156 = scmp.eq.s32.totalorder %s36, 0
      %p157 = por %p155, %p156
      %s159 = sadd.s32 %s158, 1
      %p162 = scmp.eq.s32.totalorder %s30, 1
      %p163 = scmp.ne.s32.totalorder %s158, %s160
      %p164 = scmp.eq.s32.totalorder %s30, 0
      %p165 = por %p163, %p164
      %p166 = scmp.ne.s32.totalorder %s158, %s160
      %p167 = scmp.eq.s32.totalorder %s35, 1
      %p168 = por %p166, %p167
      %p169 = scmp.ne.s32.totalorder %s160, %s161
      %p170 = scmp.eq.s32.totalorder %s35, 0
      %p171 = por %p169, %p170
      %p172 = scmp.ne.s32.totalorder %s160, %s161
      %p173 = scmp.eq.s32.totalorder %s36, 1
      %p174 = por %p172, %p173
      %p176 = scmp.ne.s32.totalorder %s161, %s175
      %p177 = scmp.eq.s32.totalorder %s36, 0
      %p178 = por %p176, %p177
      %s180 = sadd.s32 %s179, 1
      %p183 = scmp.eq.s32.totalorder %s30, 1
      %p184 = scmp.ne.s32.totalorder %s179, %s181
      %p185 = scmp.eq.s32.totalorder %s30, 0
      %p186 = por %p184, %p185
      %p187 = scmp.ne.s32.totalorder %s179, %s181
      %p188 = scmp.eq.s32.totalorder %s35, 1
      %p189 = por %p187, %p188
      %p190 = scmp.ne.s32.totalorder %s181, %s182
      %p191 = scmp.eq.s32.totalorder %s35, 0
      %p192 = por %p190, %p191
      %p193 = scmp.ne.s32.totalorder %s181, %s182
      %p194 = scmp.eq.s32.totalorder %s36, 1
      %p195 = por %p193, %p194
      %p197 = scmp.ne.s32.totalorder %s182, %s196
      %p198 = scmp.eq.s32.totalorder %s36, 0
      %p199 = por %p197, %p198
      %s201 = sadd.s32 %s200, 1
      %p204 = scmp.eq.s32.totalorder %s30, 1
      %p205 = scmp.ne.s32.totalorder %s200, %s202
      %p206 = scmp.eq.s32.totalorder %s30, 0
      %p207 = por %p205, %p206
      %p208 = scmp.ne.s32.totalorder %s200, %s202
      %p209 = scmp.eq.s32.totalorder %s35, 1
      %p210 = por %p208, %p209
      %p211 = scmp.ne.s32.totalorder %s202, %s203
      %p212 = scmp.eq.s32.totalorder %s35, 0
      %p213 = por %p211, %p212
      %p214 = scmp.ne.s32.totalorder %s202, %s203
      %p215 = scmp.eq.s32.totalorder %s36, 1
      %p216 = por %p214, %p215
      %p218 = scmp.ne.s32.totalorder %s203, %s217
      %p219 = scmp.eq.s32.totalorder %s36, 0
      %p220 = por %p218, %p219
      %s222 = sadd.s32 %s221, 1
      %p225 = scmp.eq.s32.totalorder %s30, 1
      %p226 = scmp.ne.s32.totalorder %s221, %s223
      %p227 = scmp.eq.s32.totalorder %s30, 0
      %p228 = por %p226, %p227
      %p229 = scmp.ne.s32.totalorder %s221, %s223
      %p230 = scmp.eq.s32.totalorder %s35, 1
      %p231 = por %p229, %p230
      %p232 = scmp.ne.s32.totalorder %s223, %s224
      %p233 = scmp.eq.s32.totalorder %s35, 0
      %p234 = por %p232, %p233
      %p235 = scmp.ne.s32.totalorder %s223, %s224
      %p236 = scmp.eq.s32.totalorder %s36, 1
      %p237 = por %p235, %p236
      %p239 = scmp.ne.s32.totalorder %s224, %s238
      %p240 = scmp.eq.s32.totalorder %s36, 0
      %p241 = por %p239, %p240
      %s243 = sadd.s32 %s242, 1
      %p246 = scmp.eq.s32.totalorder %s30, 1
      %p247 = scmp.ne.s32.totalorder %s242, %s244
      %p248 = scmp.eq.s32.totalorder %s30, 0
      %p249 = por %p247, %p248
      %p250 = scmp.ne.s32.totalorder %s242, %s244
      %p251 = scmp.eq.s32.totalorder %s35, 1
      %p252 = por %p250, %p251
      %p253 = scmp.ne.s32.totalorder %s244, %s245
      %p254 = scmp.eq.s32.totalorder %s35, 0
      %p255 = por %p253, %p254
      %p256 = scmp.ne.s32.totalorder %s244, %s245
      %p257 = scmp.eq.s32.totalorder %s36, 1
      %p258 = por %p256, %p257
      %p260 = scmp.ne.s32.totalorder %s245, %s259
      %p261 = scmp.eq.s32.totalorder %s36, 0
      %p262 = por %p260, %p261
      %s264 = sadd.s32 %s263, 1
      %p267 = scmp.eq.s32.totalorder %s30, 1
      %p268 = scmp.ne.s32.totalorder %s263, %s265
      %p269 = scmp.eq.s32.totalorder %s30, 0
      %p270 = por %p268, %p269
      %p271 = scmp.ne.s32.totalorder %s263, %s265
      %p272 = scmp.eq.s32.totalorder %s35, 1
      %p273 = por %p271, %p272
      %p274 = scmp.ne.s32.totalorder %s265, %s266
      %p275 = scmp.eq.s32.totalorder %s35, 0
      %p276 = por %p274, %p275
      %p277 = scmp.ne.s32.totalorder %s265, %s266
      %p278 = scmp.eq.s32.totalorder %s36, 1
      %p279 = por %p277, %p278
      %p281 = scmp.ne.s32.totalorder %s266, %s280
      %p282 = scmp.eq.s32.totalorder %s36, 0
      %p283 = por %p281, %p282
      %s285 = sadd.s32 %s284, 1
      %p288 = scmp.eq.s32.totalorder %s30, 1
      %p289 = scmp.ne.s32.totalorder %s284, %s286
      %p290 = scmp.eq.s32.totalorder %s30, 0
      %p291 = por %p289, %p290
      %p292 = scmp.ne.s32.totalorder %s284, %s286
      %p293 = scmp.eq.s32.totalorder %s35, 1
      %p294 = por %p292, %p293
      %p295 = scmp.ne.s32.totalorder %s286, %s287
      %p296 = scmp.eq.s32.totalorder %s35, 0
      %p297 = por %p295, %p296
      %p298 = scmp.ne.s32.totalorder %s286, %s287
      %p299 = scmp.eq.s32.totalorder %s36, 1
      %p300 = por %p298, %p299
      %p302 = scmp.ne.s32.totalorder %s287, %s301
      %p303 = scmp.eq.s32.totalorder %s36, 0
      %p304 = por %p302, %p303
      %s306 = sadd.s32 %s305, 1
      %p309 = scmp.eq.s32.totalorder %s30, 1
      %p310 = scmp.ne.s32.totalorder %s305, %s307
      %p311 = scmp.eq.s32.totalorder %s30, 0
      %p312 = por %p310, %p311
      %p313 = scmp.ne.s32.totalorder %s305, %s307
      %p314 = scmp.eq.s32.totalorder %s35, 1
      %p315 = por %p313, %p314
      %p316 = scmp.ne.s32.totalorder %s307, %s308
      %p317 = scmp.eq.s32.totalorder %s35, 0
      %p318 = por %p316, %p317
      %p319 = scmp.ne.s32.totalorder %s307, %s308
      %p320 = scmp.eq.s32.totalorder %s36, 1
      %p321 = por %p319, %p320
      %p323 = scmp.ne.s32.totalorder %s308, %s322
      %p324 = scmp.eq.s32.totalorder %s36, 0
      %p325 = por %p323, %p324
      %s327 = sadd.s32 %s326, 1
      %p330 = scmp.eq.s32.totalorder %s30, 1
      %p331 = scmp.ne.s32.totalorder %s326, %s328
      %p332 = scmp.eq.s32.totalorder %s30, 0
      %p333 = por %p331, %p332
      %p334 = scmp.ne.s32.totalorder %s326, %s328
      %p335 = scmp.eq.s32.totalorder %s35, 1
      %p336 = por %p334, %p335
      %p337 = scmp.ne.s32.totalorder %s328, %s329
      %p338 = scmp.eq.s32.totalorder %s35, 0
      %p339 = por %p337, %p338
      %p340 = scmp.ne.s32.totalorder %s328, %s329
      %p341 = scmp.eq.s32.totalorder %s36, 1
      %p342 = por %p340, %p341
      %p344 = scmp.ne.s32.totalorder %s329, %s343
      %p345 = scmp.eq.s32.totalorder %s36, 0
      %p346 = por %p344, %p345
      %s348 = sadd.s32 %s347, 1
      %p351 = scmp.eq.s32.totalorder %s30, 1
      %p352 = scmp.ne.s32.totalorder %s347, %s349
      %p353 = scmp.eq.s32.totalorder %s30, 0
      %p354 = por %p352, %p353
      %p355 = scmp.ne.s32.totalorder %s347, %s349
      %p356 = scmp.eq.s32.totalorder %s35, 1
      %p357 = por %p355, %p356
      %p358 = scmp.ne.s32.totalorder %s349, %s350
      %p359 = scmp.eq.s32.totalorder %s35, 0
      %p360 = por %p358, %p359
      %p361 = scmp.ne.s32.totalorder %s349, %s350
      %p362 = scmp.eq.s32.totalorder %s36, 1
      %p363 = por %p361, %p362
      %p365 = scmp.ne.s32.totalorder %s350, %s364
      %p366 = scmp.eq.s32.totalorder %s36, 0
      %p367 = por %p365, %p366
      %s368 = ssub.s32 %s30, %s37
      %p369 = scmp.eq.s32.totalorder %s368, 0
      %s371 = sadd.s32 %s370, 1
      %s372 = scalar_select %p369, %s370, %s371
      %p375 = pneg %p369
      %p376 = scmp.eq.s32.totalorder %s30, 1
      %p377 = por %p375, %p376
      %p378 = scmp.ne.s32.totalorder %s370, %s373
      %p379 = scmp.eq.s32.totalorder %s30, 0
      %p380 = por %p378, %p379
      %p381 = scmp.ne.s32.totalorder %s370, %s373
      %p382 = scmp.eq.s32.totalorder %s35, 1
      %p383 = por %p381, %p382
      %p384 = scmp.ne.s32.totalorder %s373, %s374
      %p385 = scmp.eq.s32.totalorder %s35, 0
      %p386 = por %p384, %p385
      %p387 = scmp.ne.s32.totalorder %s373, %s374
      %p388 = scmp.eq.s32.totalorder %s36, 1
      %p389 = por %p387, %p388
      %p391 = scmp.ne.s32.totalorder %s374, %s390
      %p392 = scmp.eq.s32.totalorder %s36, 0
      %p393 = por %p391, %p392
      %p394 = scmp.le.s32.totalorder 1, %s30
      %p395 = scmp.lt.s32.totalorder %s30, 3
      %p396 = pnand %p394, %p395
      %p397 = pneg %p396
      // Predicated region
      $region9: #{tpu_custom_call.1} parent=5 // pred_check
        _
      $region10: #{tpu_custom_call.1} parent=5 // pred_check_branch
        %399 = sbr.rel (%p396) target = $region12
      $region11: #{tpu_custom_call.1} parent=5 // pred_region
        %s400 = ssub.s32 %s30, 1
        // Predicated region
        $region13: #{tpu_custom_call.1} parent=11 // pred_check
          %p401 = pneg %p129
        $region14: #{tpu_custom_call.1} parent=11 // pred_check_branch
          %403 = sbr.rel (%p401) target = $region16
        $region15: #{tpu_custom_call.1} parent=11 // pred_region
          _
        $region16: #{tpu_custom_call.1} parent=11 // pred_fallthru
          _
        // Predicated region
        $region17: #{tpu_custom_call.1} parent=11 // pred_check
          %p404 = pneg %p150
        $region18: #{tpu_custom_call.1} parent=11 // pred_check_branch
          %406 = sbr.rel (%p404) target = $region20
        $region19: #{tpu_custom_call.1} parent=11 // pred_region
          _
        $region20: #{tpu_custom_call.1} parent=11 // pred_fallthru
          _
        // Predicated region
        $region21: #{tpu_custom_call.1} parent=11 // pred_check
          %p407 = pneg %p171
        $region22: #{tpu_custom_call.1} parent=11 // pred_check_branch
          %409 = sbr.rel (%p407) target = $region24
        $region23: #{tpu_custom_call.1} parent=11 // pred_region
          _
        $region24: #{tpu_custom_call.1} parent=11 // pred_fallthru
          _
        // Predicated region
        $region25: #{tpu_custom_call.1} parent=11 // pred_check
          %p410 = pneg %p192
        $region26: #{tpu_custom_call.1} parent=11 // pred_check_branch
          %412 = sbr.rel (%p410) target = $region28
        $region27: #{tpu_custom_call.1} parent=11 // pred_region
          _
        $region28: #{tpu_custom_call.1} parent=11 // pred_fallthru
          _
        // Predicated region
        $region29: #{tpu_custom_call.1} parent=11 // pred_check
          %p413 = pneg %p213
        $region30: #{tpu_custom_call.1} parent=11 // pred_check_branch
          %415 = sbr.rel (%p413) target = $region32
        $region31: #{tpu_custom_call.1} parent=11 // pred_region
          _
        $region32: #{tpu_custom_call.1} parent=11 // pred_fallthru
          _
        // Predicated region
        $region33: #{tpu_custom_call.1} parent=11 // pred_check
          %p416 = pneg %p234
        $region34: #{tpu_custom_call.1} parent=11 // pred_check_branch
          %418 = sbr.rel (%p416) target = $region36
        $region35: #{tpu_custom_call.1} parent=11 // pred_region
          _
        $region36: #{tpu_custom_call.1} parent=11 // pred_fallthru
          _
        // Predicated region
        $region37: #{tpu_custom_call.1} parent=11 // pred_check
          %p419 = pneg %p255
        $region38: #{tpu_custom_call.1} parent=11 // pred_check_branch
          %421 = sbr.rel (%p419) target = $region40
        $region39: #{tpu_custom_call.1} parent=11 // pred_region
          _
        $region40: #{tpu_custom_call.1} parent=11 // pred_fallthru
          _
        // Predicated region
        $region41: #{tpu_custom_call.1} parent=11 // pred_check
          %p422 = pneg %p276
        $region42: #{tpu_custom_call.1} parent=11 // pred_check_branch
          %424 = sbr.rel (%p422) target = $region44
        $region43: #{tpu_custom_call.1} parent=11 // pred_region
          _
        $region44: #{tpu_custom_call.1} parent=11 // pred_fallthru
          _
        // Predicated region
        $region45: #{tpu_custom_call.1} parent=11 // pred_check
          %p425 = pneg %p297
        $region46: #{tpu_custom_call.1} parent=11 // pred_check_branch
          %427 = sbr.rel (%p425) target = $region48
        $region47: #{tpu_custom_call.1} parent=11 // pred_region
          _
        $region48: #{tpu_custom_call.1} parent=11 // pred_fallthru
          _
        // Predicated region
        $region49: #{tpu_custom_call.1} parent=11 // pred_check
          %p428 = pneg %p318
        $region50: #{tpu_custom_call.1} parent=11 // pred_check_branch
          %430 = sbr.rel (%p428) target = $region52
        $region51: #{tpu_custom_call.1} parent=11 // pred_region
          _
        $region52: #{tpu_custom_call.1} parent=11 // pred_fallthru
          _
        // Predicated region
        $region53: #{tpu_custom_call.1} parent=11 // pred_check
          %p431 = pneg %p339
        $region54: #{tpu_custom_call.1} parent=11 // pred_check_branch
          %433 = sbr.rel (%p431) target = $region56
        $region55: #{tpu_custom_call.1} parent=11 // pred_region
          _
        $region56: #{tpu_custom_call.1} parent=11 // pred_fallthru
          _
        // Predicated region
        $region57: #{tpu_custom_call.1} parent=11 // pred_check
          %p434 = pneg %p360
        $region58: #{tpu_custom_call.1} parent=11 // pred_check_branch
          %436 = sbr.rel (%p434) target = $region60
        $region59: #{tpu_custom_call.1} parent=11 // pred_region
          _
        $region60: #{tpu_custom_call.1} parent=11 // pred_fallthru
          _
      $region12: #{tpu_custom_call.1} parent=5 // pred_fallthru
        _
      %p437 = scmp.lt.s32.totalorder %s30, 2
      // Predicated region
      $region61: #{tpu_custom_call.1} parent=5 // pred_check
        %p438 = pneg %p437
      $region62: #{tpu_custom_call.1} parent=5 // pred_check_branch
        %440 = sbr.rel (%p438) target = $region64
      $region63: #{tpu_custom_call.1} parent=5 // pred_region
        // Predicated region
        $region65: #{tpu_custom_call.1} parent=63 // pred_check
          %p441 = pneg %p50
        $region66: #{tpu_custom_call.1} parent=63 // pred_check_branch
          %443 = sbr.rel (%p441) target = $region68
        $region67: #{tpu_custom_call.1} parent=63 // pred_region
          %p444 = scmp.lt.s32.totalorder %s30, 1
          %s445 = scalar_select %p444, %s30, 1
          %s446 = smul.addr %s445, 8
          %s447 = scalar_lea.vmem %s0, %s446
        $region68: #{tpu_custom_call.1} parent=63 // pred_fallthru
          _
        // Predicated region
        $region69: #{tpu_custom_call.1} parent=63 // pred_check
          %p448 = pneg %p76
        $region70: #{tpu_custom_call.1} parent=63 // pred_check_branch
          %450 = sbr.rel (%p448) target = $region72
        $region71: #{tpu_custom_call.1} parent=63 // pred_region
          %s451 = sand.u32 %s66, 1
          %s452 = scalar_lea.sflag [#allocation3], %s451
          %s453 = sand.u32 %s66, 1
          %s454 = smul.addr %s453, 8
          %s455 = scalar_lea.vmem [#allocation2], %s454
          %s457 = ssub.s32 128, 128
          %458 = vsyncadd %s452, %s457
          %s459 = smul.addr %s30, 128
          %s460 = scalar_lea.hbm %s1, %s459
          %s462 = sshll.u32 %s455, 4
          %s463 = int_to_ptr.vmem [resolvable:$true] %s462
          %465 = dma.hbm_to_vmem [thread:$0]  %s460, 128, %s463, %s452
        $region72: #{tpu_custom_call.1} parent=63 // pred_fallthru
          _
        // Predicated region
        $region73: #{tpu_custom_call.1} parent=63 // pred_check
          %p466 = pneg %p102
        $region74: #{tpu_custom_call.1} parent=63 // pred_check_branch
          %468 = sbr.rel (%p466) target = $region76
        $region75: #{tpu_custom_call.1} parent=63 // pred_region
          %s469 = sand.u32 %s92, 1
          %s470 = scalar_lea.sflag [#allocation6], %s469
          %s471 = sand.u32 %s92, 1
          %s472 = smul.addr %s471, 8
          %s473 = scalar_lea.vmem [#allocation5], %s472
          %s475 = ssub.s32 128, 128
          %476 = vsyncadd %s470, %s475
          %s477 = smul.addr %s30, 128
          %s478 = scalar_lea.hbm %s2, %s477
          %s480 = sshll.u32 %s473, 4
          %s481 = int_to_ptr.vmem [resolvable:$true] %s480
          %483 = dma.hbm_to_vmem [thread:$0]  %s478, 128, %s481, %s470
        $region76: #{tpu_custom_call.1} parent=63 // pred_fallthru
          _
      $region64: #{tpu_custom_call.1} parent=5 // pred_fallthru
        _
      %p484 = scmp.le.s32.totalorder 1, %s30
      %p485 = scmp.lt.s32.totalorder %s30, 3
      %p486 = pnand %p484, %p485
      %p487 = pneg %p486
      // Predicated region
      $region77: #{tpu_custom_call.1} parent=5 // pred_check
        _
      $region78: #{tpu_custom_call.1} parent=5 // pred_check_branch
        %489 = sbr.rel (%p486) target = $region80
      $region79: #{tpu_custom_call.1} parent=5 // pred_region
        %s490 = ssub.s32 %s30, 1
        %s491 = sand.u32 %s69, 1
        %s492 = scalar_lea.sflag [#allocation3], %s491
        %s493 = sand.u32 %s69, 1
        %s494 = smul.addr %s493, 8
        %s495 = scalar_lea.vmem [#allocation2], %s494
        // Predicated region
        $region81: #{tpu_custom_call.1} parent=79 // pred_check
          %p496 = pneg %p82
        $region82: #{tpu_custom_call.1} parent=79 // pred_check_branch
          %498 = sbr.rel (%p496) target = $region84
        $region83: #{tpu_custom_call.1} parent=79 // pred_region
          %499 = dma.done %s492, 128
        $region84: #{tpu_custom_call.1} parent=79 // pred_fallthru
          _
        %s500 = sand.u32 %s95, 1
        %s501 = scalar_lea.sflag [#allocation6], %s500
        %s502 = sand.u32 %s95, 1
        %s503 = smul.addr %s502, 8
        %s504 = scalar_lea.vmem [#allocation5], %s503
        // Predicated region
        $region85: #{tpu_custom_call.1} parent=79 // pred_check
          %p505 = pneg %p108
        $region86: #{tpu_custom_call.1} parent=79 // pred_check_branch
          %507 = sbr.rel (%p505) target = $region88
        $region87: #{tpu_custom_call.1} parent=79 // pred_region
          %508 = dma.done %s501, 128
        $region88: #{tpu_custom_call.1} parent=79 // pred_fallthru
          _
        %p509 = scmp.lt.s32.totalorder %s35, 1
        %s510 = scalar_select %p509, %s35, 1
        %s511 = smul.addr %s510, 8
        %s512 = scalar_lea.vmem %s0, %s511
        %p513 = pneg %p56
        %p514 = pneg %p53
        %s515 = sand.u32 %s69, 1
        %s516 = scalar_lea.sflag [#allocation3], %s515
        %s517 = sand.u32 %s69, 1
        %s518 = smul.addr %s517, 8
        %s519 = scalar_lea.vmem [#allocation2], %s518
        %p520 = pneg %p82
        %p521 = pneg %p79
        %s522 = sand.u32 %s95, 1
        %s523 = scalar_lea.sflag [#allocation6], %s522
        %s524 = sand.u32 %s95, 1
        %s525 = smul.addr %s524, 8
        %s526 = scalar_lea.vmem [#allocation5], %s525
        %p527 = pneg %p108
        %p528 = pneg %p105
        %p529 = pneg %p129
        %p530 = pneg %p126
        %p531 = pneg %p150
        %p532 = pneg %p147
        %p533 = pneg %p171
        %p534 = pneg %p168
        %p535 = pneg %p192
        %p536 = pneg %p189
        %p537 = pneg %p213
        %p538 = pneg %p210
        %p539 = pneg %p234
        %p540 = pneg %p231
        %p541 = pneg %p255
        %p542 = pneg %p252
        %p543 = pneg %p276
        %p544 = pneg %p273
        %p545 = pneg %p297
        %p546 = pneg %p294
        %p547 = pneg %p318
        %p548 = pneg %p315
        %p549 = pneg %p339
        %p550 = pneg %p336
        %p551 = pneg %p360
        %p552 = pneg %p357
        %p553 = pneg %p386
        %p554 = pneg %p383
        %s555 = sand.u32 %s373, 1
        %s556 = scalar_lea.sflag [#allocation4], %s555
        %s557 = sand.u32 %s373, 1
        %s558 = smul.addr %s557, 8
        %s559 = scalar_lea.vmem [#allocation7], %s558
        %p560 = scmp.lt.s32.totalorder %s35, 1
        %s561 = scalar_select %p560, %s35, 1
        %s562 = smul.addr %s561, 8
        %s563 = scalar_lea.vmem %s0, %s562
        %v564 = vld [vmem:[%s563] sm:$0xff]
        %v565 = vld [vmem:[%s495] sm:$0xff]
        %v566 = vld [vmem:[%s504] sm:$0xff]
        %v567 = vld [vmem:[%s3] sm:$0x1]
        %v568 = vmul.f32 %v564, %v564
        %vm569 = vcmask 261120
        %v570 = vsel %vm569, %v568, 0.0
        %571 = vadd.xlane.f32.xlu0 %v570
        %v572 = vpop.xlane.xlu0 %571
        %v573 = vrcp.pop 32.0
        %v574 = vmul.f32 %v572, %v573
        %v575 = vadd.f32 %v574, 1e-06
        %v576 = vrsqrt.pop %v575
        %v577 = vmul.f32 %v564, %v576
        %v579 = vlaneseq
        %v580 = vshrl.u32 %v579, 7
        %v581 = vsub.s32 0, %v580
        %v582 = vrot.slane %v567, %v581
        %v584 = vmul.f32 %v577, %v582
        %v585 = vld [vmem:[%s4] sm:$0xff]
        %v586 = vld [vmem:[%s4 + $0x8] sm:$0xff]
        %v587 = vld [vmem:[%s4 + $0x10] sm:$0xff]
        %v588 = vld [vmem:[%s4 + $0x18] sm:$0xff]
        %v589 = vld [vmem:[%s5] sm:$0x1]
        %v591 = vlaneseq
        %v592 = vshrl.u32 %v591, 7
        %v593 = vsub.s32 0, %v592
        %v594 = vrot.slane %v589, %v593
        %v597 = vsel %vm569, %v584, 0
        %599 = vmatprep.subr.mxu0 0.0
        %600 = vmatpush1.msra.mxu0 %v585
        %601 = vmatprep.subr.mxu0 0.0
        %602 = vmatpush1.msra.mxu0 %v586
        %603 = vmatprep.subr.mxu0 0.0
        %604 = vmatpush1.msra.mxu0 %v587
        %605 = vmatprep.subr.mxu0 0.0
        %606 = vmatpush1.msra.mxu0 %v588
        %607 = vmatprep.subr.mxu0 0.0
        %608 = vmatpush1.msra.mxu0 0.0
        %609 = vmatprep.subr.mxu0 0.0
        %610 = vmatpush1.msra.mxu0 0.0
        %611 = vmatprep.subr.mxu0 0.0
        %612 = vmatpush1.msra.mxu0 0.0
        %613 = vmatprep.subr.mxu0 0.0
        %614 = vmatpush1.msra.mxu0 0.0
        %615 = vmatprep.subr.mxu0 0.0
        %616 = vmatpush1.msra.mxu0 0.0
        %617 = vmatprep.subr.mxu0 0.0
        %618 = vmatpush1.msra.mxu0 0.0
        %619 = vmatprep.subr.mxu0 0.0
        %620 = vmatpush1.msra.mxu0 0.0
        %621 = vmatprep.subr.mxu0 0.0
        %622 = vmatpush1.msra.mxu0 0.0
        %623 = vmatprep.subr.mxu0 0.0
        %624 = vmatpush1.msra.mxu0 0.0
        %625 = vmatprep.subr.mxu0 0.0
        %626 = vmatpush1.msra.mxu0 0.0
        %627 = vmatprep.subr.mxu0 0.0
        %628 = vmatpush1.msra.mxu0 0.0
        %629 = vmatprep.subr.mxu0 0.0
        %630 = vmatpush1.msra.mxu0 0.0
        %631 = vmatprep.subr.mxu0 0.0
        %632 = vmatpush1.msra.mxu0 0.0
        %633 = vmatprep.subr.mxu0 0.0
        %634 = vmatpush1.msra.mxu0 0.0
        %635 = vmatprep.subr.mxu0 0.0
        %636 = vmatpush1.msra.mxu0 0.0
        %637 = vmatprep.subr.mxu0 0.0
        %638 = vmatpush1.msra.mxu0 0.0
        %639 = vmatprep.subr.mxu0 0.0
        %640 = vmatpush1.msra.mxu0 0.0
        %641 = vmatprep.subr.mxu0 0.0
        %642 = vmatpush1.msra.mxu0 0.0
        %643 = vmatprep.subr.mxu0 0.0
        %644 = vmatpush1.msra.mxu0 0.0
        %645 = vmatprep.subr.mxu0 0.0
        %646 = vmatpush1.msra.mxu0 0.0
        %647 = vmatprep.subr.mxu0 0.0
        %648 = vmatpush1.msra.mxu0 0.0
        %649 = vmatprep.subr.mxu0 0.0
        %650 = vmatpush1.msra.mxu0 0.0
        %651 = vmatprep.subr.mxu0 0.0
        %652 = vmatpush1.msra.mxu0 0.0
        %653 = vmatprep.subr.mxu0 0.0
        %654 = vmatpush1.msra.mxu0 0.0
        %655 = vmatprep.subr.mxu0 0.0
        %656 = vmatpush1.msra.mxu0 0.0
        %657 = vmatprep.subr.mxu0 0.0
        %658 = vmatpush1.msra.mxu0 0.0
        %659 = vmatprep.subr.mxu0 0.0
        %660 = vmatpush1.msra.mxu0 0.0
        %661 = vmatprep.subr.mxu0 0.0
        %662 = vmatpush1.msra.mxu0 0.0
        %663 = vmatprep.mubr.f32.mxu0 0.0
        %664 = vmatmul.mubr.f32.gmra.mrb[0].mxu0 %v597
        %v665 = vpop.f32.mrb[0].mxu0
        %v666 = vadd.f32 %v594, %v665
        %v667 = vpop.f32.mrb[0].mxu0
        %668 = vdwg.mxu0
        %v669 = vld [vmem:[%s6] sm:$0xff]
        %v670 = vld [vmem:[%s6 + $0x8] sm:$0xff]
        %v671 = vld [vmem:[%s6 + $0x10] sm:$0xff]
        %v672 = vld [vmem:[%s6 + $0x18] sm:$0xff]
        %v673 = vld [vmem:[%s7] sm:$0x1]
        %v675 = vlaneseq
        %v676 = vshrl.u32 %v675, 7
        %v677 = vsub.s32 0, %v676
        %v678 = vrot.slane %v673, %v677
        %680 = vmatprep.subr.mxu0 0.0
        %681 = vmatpush1.msra.mxu0 %v669
        %682 = vmatprep.subr.mxu0 0.0
        %683 = vmatpush1.msra.mxu0 %v670
        %684 = vmatprep.subr.mxu0 0.0
        %685 = vmatpush1.msra.mxu0 %v671
        %686 = vmatprep.subr.mxu0 0.0
        %687 = vmatpush1.msra.mxu0 %v672
        %688 = vmatprep.subr.mxu0 0.0
        %689 = vmatpush1.msra.mxu0 0.0
        %690 = vmatprep.subr.mxu0 0.0
        %691 = vmatpush1.msra.mxu0 0.0
        %692 = vmatprep.subr.mxu0 0.0
        %693 = vmatpush1.msra.mxu0 0.0
        %694 = vmatprep.subr.mxu0 0.0
        %695 = vmatpush1.msra.mxu0 0.0
        %696 = vmatprep.subr.mxu0 0.0
        %697 = vmatpush1.msra.mxu0 0.0
        %698 = vmatprep.subr.mxu0 0.0
        %699 = vmatpush1.msra.mxu0 0.0
        %700 = vmatprep.subr.mxu0 0.0
        %701 = vmatpush1.msra.mxu0 0.0
        %702 = vmatprep.subr.mxu0 0.0
        %703 = vmatpush1.msra.mxu0 0.0
        %704 = vmatprep.subr.mxu0 0.0
        %705 = vmatpush1.msra.mxu0 0.0
        %706 = vmatprep.subr.mxu0 0.0
        %707 = vmatpush1.msra.mxu0 0.0
        %708 = vmatprep.subr.mxu0 0.0
        %709 = vmatpush1.msra.mxu0 0.0
        %710 = vmatprep.subr.mxu0 0.0
        %711 = vmatpush1.msra.mxu0 0.0
        %712 = vmatprep.subr.mxu0 0.0
        %713 = vmatpush1.msra.mxu0 0.0
        %714 = vmatprep.subr.mxu0 0.0
        %715 = vmatpush1.msra.mxu0 0.0
        %716 = vmatprep.subr.mxu0 0.0
        %717 = vmatpush1.msra.mxu0 0.0
        %718 = vmatprep.subr.mxu0 0.0
        %719 = vmatpush1.msra.mxu0 0.0
        %720 = vmatprep.subr.mxu0 0.0
        %721 = vmatpush1.msra.mxu0 0.0
        %722 = vmatprep.subr.mxu0 0.0
        %723 = vmatpush1.msra.mxu0 0.0
        %724 = vmatprep.subr.mxu0 0.0
        %725 = vmatpush1.msra.mxu0 0.0
        %726 = vmatprep.subr.mxu0 0.0
        %727 = vmatpush1.msra.mxu0 0.0
        %728 = vmatprep.subr.mxu0 0.0
        %729 = vmatpush1.msra.mxu0 0.0
        %730 = vmatprep.subr.mxu0 0.0
        %731 = vmatpush1.msra.mxu0 0.0
        %732 = vmatprep.subr.mxu0 0.0
        %733 = vmatpush1.msra.mxu0 0.0
        %734 = vmatprep.subr.mxu0 0.0
        %735 = vmatpush1.msra.mxu0 0.0
        %736 = vmatprep.subr.mxu0 0.0
        %737 = vmatpush1.msra.mxu0 0.0
        %738 = vmatprep.subr.mxu0 0.0
        %739 = vmatpush1.msra.mxu0 0.0
        %740 = vmatprep.subr.mxu0 0.0
        %741 = vmatpush1.msra.mxu0 0.0
        %742 = vmatprep.subr.mxu0 0.0
        %743 = vmatpush1.msra.mxu0 0.0
        %744 = vmatprep.mubr.f32.mxu0 0.0
        %745 = vmatmul.mubr.f32.gmra.mrb[0].mxu0 %v597
        %v746 = vpop.f32.mrb[0].mxu0
        %v747 = vadd.f32 %v678, %v746
        %v748 = vpop.f32.mrb[0].mxu0
        %749 = vdwg.mxu0
        %v750 = vld [vmem:[%s8] sm:$0xff]
        %v751 = vld [vmem:[%s8 + $0x8] sm:$0xff]
        %v752 = vld [vmem:[%s8 + $0x10] sm:$0xff]
        %v753 = vld [vmem:[%s8 + $0x18] sm:$0xff]
        %v754 = vld [vmem:[%s9] sm:$0x1]
        %v756 = vlaneseq
        %v757 = vshrl.u32 %v756, 7
        %v758 = vsub.s32 0, %v757
        %v759 = vrot.slane %v754, %v758
        %761 = vmatprep.subr.mxu0 0.0
        %762 = vmatpush1.msra.mxu0 %v750
        %763 = vmatprep.subr.mxu0 0.0
        %764 = vmatpush1.msra.mxu0 %v751
        %765 = vmatprep.subr.mxu0 0.0
        %766 = vmatpush1.msra.mxu0 %v752
        %767 = vmatprep.subr.mxu0 0.0
        %768 = vmatpush1.msra.mxu0 %v753
        %769 = vmatprep.subr.mxu0 0.0
        %770 = vmatpush1.msra.mxu0 0.0
        %771 = vmatprep.subr.mxu0 0.0
        %772 = vmatpush1.msra.mxu0 0.0
        %773 = vmatprep.subr.mxu0 0.0
        %774 = vmatpush1.msra.mxu0 0.0
        %775 = vmatprep.subr.mxu0 0.0
        %776 = vmatpush1.msra.mxu0 0.0
        %777 = vmatprep.subr.mxu0 0.0
        %778 = vmatpush1.msra.mxu0 0.0
        %779 = vmatprep.subr.mxu0 0.0
        %780 = vmatpush1.msra.mxu0 0.0
        %781 = vmatprep.subr.mxu0 0.0
        %782 = vmatpush1.msra.mxu0 0.0
        %783 = vmatprep.subr.mxu0 0.0
        %784 = vmatpush1.msra.mxu0 0.0
        %785 = vmatprep.subr.mxu0 0.0
        %786 = vmatpush1.msra.mxu0 0.0
        %787 = vmatprep.subr.mxu0 0.0
        %788 = vmatpush1.msra.mxu0 0.0
        %789 = vmatprep.subr.mxu0 0.0
        %790 = vmatpush1.msra.mxu0 0.0
        %791 = vmatprep.subr.mxu0 0.0
        %792 = vmatpush1.msra.mxu0 0.0
        %793 = vmatprep.subr.mxu0 0.0
        %794 = vmatpush1.msra.mxu0 0.0
        %795 = vmatprep.subr.mxu0 0.0
        %796 = vmatpush1.msra.mxu0 0.0
        %797 = vmatprep.subr.mxu0 0.0
        %798 = vmatpush1.msra.mxu0 0.0
        %799 = vmatprep.subr.mxu0 0.0
        %800 = vmatpush1.msra.mxu0 0.0
        %801 = vmatprep.subr.mxu0 0.0
        %802 = vmatpush1.msra.mxu0 0.0
        %803 = vmatprep.subr.mxu0 0.0
        %804 = vmatpush1.msra.mxu0 0.0
        %805 = vmatprep.subr.mxu0 0.0
        %806 = vmatpush1.msra.mxu0 0.0
        %807 = vmatprep.subr.mxu0 0.0
        %808 = vmatpush1.msra.mxu0 0.0
        %809 = vmatprep.subr.mxu0 0.0
        %810 = vmatpush1.msra.mxu0 0.0
        %811 = vmatprep.subr.mxu0 0.0
        %812 = vmatpush1.msra.mxu0 0.0
        %813 = vmatprep.subr.mxu0 0.0
        %814 = vmatpush1.msra.mxu0 0.0
        %815 = vmatprep.subr.mxu0 0.0
        %816 = vmatpush1.msra.mxu0 0.0
        %817 = vmatprep.subr.mxu0 0.0
        %818 = vmatpush1.msra.mxu0 0.0
        %819 = vmatprep.subr.mxu0 0.0
        %820 = vmatpush1.msra.mxu0 0.0
        %821 = vmatprep.subr.mxu0 0.0
        %822 = vmatpush1.msra.mxu0 0.0
        %823 = vmatprep.subr.mxu0 0.0
        %824 = vmatpush1.msra.mxu0 0.0
        %825 = vmatprep.mubr.f32.mxu0 0.0
        %826 = vmatmul.mubr.f32.gmra.mrb[0].mxu0 %v597
        %v827 = vpop.f32.mrb[0].mxu0
        %v828 = vadd.f32 %v759, %v827
        %v829 = vpop.f32.mrb[0].mxu0
        %830 = vdwg.mxu0
        %v831 = vlaneseq
        %v832 = vshrl.u32 %v831, 7
        %v833 = vlaneseq
        %v834 = vand.u32 %v833, 127
        %vm835 = vcmp.le.s32.totalorder %v834, %v832
        %v836 = vsub.f32 0.0, %v747
        %838 = vrot.lane.b32.xlu0 %v836, 124
        %v839 = vpop.permute.xlu0 %838
        %842 = vrot.lane.b32.xlu0 %v747, 4
        %v843 = vpop.permute.xlu0 %842
        %vm845 = vcmask 31744
        %v846 = vsel %vm845, %v839, %v843
        %v847 = vmul.f32 %v747, %v565
        %v848 = vmul.f32 %v846, %v566
        %v849 = vadd.f32 %v847, %v848
        %850 = vrot.lane.b32.xlu0 %v836, 116
        %v851 = vpop.permute.xlu0 %850
        %853 = vrot.lane.b32.xlu0 %v747, 124
        %v854 = vpop.permute.xlu0 %853
        %v856 = vsel %vm845, %v851, %v854
        %858 = vrot.lane.b32.xlu0 %v565, 8
        %v859 = vpop.permute.xlu0 %858
        %v861 = vmul.f32 %v747, %v859
        %v862 = vmul.f32 %v856, %v566
        %864 = vrot.lane.b32.xlu0 %v862, 8
        %v865 = vpop.permute.xlu0 %864
        %v867 = vadd.f32 %v861, %v865
        %v868 = vsub.f32 0.0, %v666
        %870 = vrot.lane.b32.xlu0 %v868, 124
        %v871 = vpop.permute.xlu0 %870
        %874 = vrot.lane.b32.xlu0 %v666, 4
        %v875 = vpop.permute.xlu0 %874
        %v877 = vsel %vm845, %v871, %v875
        %v878 = vmul.f32 %v666, %v565
        %v879 = vmul.f32 %v877, %v566
        %v880 = vadd.f32 %v878, %v879
        %v881 = vmul.f32 %v880, 0.35355338
        %vm882 = vcmask 64512
        %v884 = vsel %vm882, %v881, 0
        %v887 = vsel %vm882, %v849, 0
        %889 = vmatprep.subr.mxu0 0.0
        %890 = vmatpush1.xpose.msra.mxu0 %v887
        %891 = vmatprep.subr.mxu0 0.0
        %892 = vmatpush1.xpose.msra.mxu0 0.0
        %893 = vmatprep.subr.mxu0 0.0
        %894 = vmatpush1.xpose.msra.mxu0 0.0
        %895 = vmatprep.subr.mxu0 0.0
        %896 = vmatpush1.xpose.msra.mxu0 0.0
        %897 = vmatprep.subr.mxu0 0.0
        %898 = vmatpush1.xpose.msra.mxu0 0.0
        %899 = vmatprep.subr.mxu0 0.0
        %900 = vmatpush1.xpose.msra.mxu0 0.0
        %901 = vmatprep.subr.mxu0 0.0
        %902 = vmatpush1.xpose.msra.mxu0 0.0
        %903 = vmatprep.subr.mxu0 0.0
        %904 = vmatpush1.xpose.msra.mxu0 0.0
        %905 = vmatprep.subr.mxu0 0.0
        %906 = vmatpush1.xpose.msra.mxu0 0.0
        %907 = vmatprep.subr.mxu0 0.0
        %908 = vmatpush1.xpose.msra.mxu0 0.0
        %909 = vmatprep.subr.mxu0 0.0
        %910 = vmatpush1.xpose.msra.mxu0 0.0
        %911 = vmatprep.subr.mxu0 0.0
        %912 = vmatpush1.xpose.msra.mxu0 0.0
        %913 = vmatprep.subr.mxu0 0.0
        %914 = vmatpush1.xpose.msra.mxu0 0.0
        %915 = vmatprep.subr.mxu0 0.0
        %916 = vmatpush1.xpose.msra.mxu0 0.0
        %917 = vmatprep.subr.mxu0 0.0
        %918 = vmatpush1.xpose.msra.mxu0 0.0
        %919 = vmatprep.subr.mxu0 0.0
        %920 = vmatpush1.xpose.msra.mxu0 0.0
        %921 = vmatprep.subr.mxu0 0.0
        %922 = vmatpush1.xpose.msra.mxu0 0.0
        %923 = vmatprep.subr.mxu0 0.0
        %924 = vmatpush1.xpose.msra.mxu0 0.0
        %925 = vmatprep.subr.mxu0 0.0
        %926 = vmatpush1.xpose.msra.mxu0 0.0
        %927 = vmatprep.subr.mxu0 0.0
        %928 = vmatpush1.xpose.msra.mxu0 0.0
        %929 = vmatprep.subr.mxu0 0.0
        %930 = vmatpush1.xpose.msra.mxu0 0.0
        %931 = vmatprep.subr.mxu0 0.0
        %932 = vmatpush1.xpose.msra.mxu0 0.0
        %933 = vmatprep.subr.mxu0 0.0
        %934 = vmatpush1.xpose.msra.mxu0 0.0
        %935 = vmatprep.subr.mxu0 0.0
        %936 = vmatpush1.xpose.msra.mxu0 0.0
        %937 = vmatprep.subr.mxu0 0.0
        %938 = vmatpush1.xpose.msra.mxu0 0.0
        %939 = vmatprep.subr.mxu0 0.0
        %940 = vmatpush1.xpose.msra.mxu0 0.0
        %941 = vmatprep.subr.mxu0 0.0
        %942 = vmatpush1.xpose.msra.mxu0 0.0
        %943 = vmatprep.subr.mxu0 0.0
        %944 = vmatpush1.xpose.msra.mxu0 0.0
        %945 = vmatprep.subr.mxu0 0.0
        %946 = vmatpush1.xpose.msra.mxu0 0.0
        %947 = vmatprep.subr.mxu0 0.0
        %948 = vmatpush1.xpose.msra.mxu0 0.0
        %949 = vmatprep.subr.mxu0 0.0
        %950 = vmatpush1.xpose.msra.mxu0 0.0
        %951 = vmatprep.subr.mxu0 0.0
        %952 = vmatpush1.xpose.msra.mxu0 0.0
        %953 = vmatprep.mubr.f32.mxu0 0.0
        %954 = vmatmul.mubr.f32.gmra.mrb[0].mxu0 %v884
        %v955 = vpop.f32.mrb[0].mxu0
        %v956 = vadd.f32 0.0, %v955
        %v957 = vpop.f32.mrb[0].mxu0
        %958 = vdwg.mxu0
        %v959 = vsel %vm835, %v956, -1e+30
        %v960 = vsel %vm882, %v959, -inf
        %961 = vmax.xlane.f32.xlu0 %v960
        %v962 = vpop.xlane.xlu0 %961
        %v963 = vsub.f32 %v959, %v962
        %v964 = vmul.f32 %v963, 1.442695
        %v965 = vpow.pop %v964
        %v966 = vsel %vm882, %v965, 0.0
        %967 = vadd.xlane.f32.xlu0 %v966
        %v968 = vpop.xlane.xlu0 %967
        %v969 = vrcp.pop %v968
        %v970 = vmul.f32 %v965, %v969
        %v972 = vsel %vm882, %v970, 0
        %974 = vmatprep.subr.mxu0 0.0
        %975 = vmatpush1.msra.mxu0 %v828
        %976 = vmatprep.subr.mxu0 0.0
        %977 = vmatpush1.msra.mxu0 0.0
        %978 = vmatprep.subr.mxu0 0.0
        %979 = vmatpush1.msra.mxu0 0.0
        %980 = vmatprep.subr.mxu0 0.0
        %981 = vmatpush1.msra.mxu0 0.0
        %982 = vmatprep.subr.mxu0 0.0
        %983 = vmatpush1.msra.mxu0 0.0
        %984 = vmatprep.subr.mxu0 0.0
        %985 = vmatpush1.msra.mxu0 0.0
        %986 = vmatprep.subr.mxu0 0.0
        %987 = vmatpush1.msra.mxu0 0.0
        %988 = vmatprep.subr.mxu0 0.0
        %989 = vmatpush1.msra.mxu0 0.0
        %990 = vmatprep.subr.mxu0 0.0
        %991 = vmatpush1.msra.mxu0 0.0
        %992 = vmatprep.subr.mxu0 0.0
        %993 = vmatpush1.msra.mxu0 0.0
        %994 = vmatprep.subr.mxu0 0.0
        %995 = vmatpush1.msra.mxu0 0.0
        %996 = vmatprep.subr.mxu0 0.0
        %997 = vmatpush1.msra.mxu0 0.0
        %998 = vmatprep.subr.mxu0 0.0
        %999 = vmatpush1.msra.mxu0 0.0
        %1000 = vmatprep.subr.mxu0 0.0
        %1001 = vmatpush1.msra.mxu0 0.0
        %1002 = vmatprep.subr.mxu0 0.0
        %1003 = vmatpush1.msra.mxu0 0.0
        %1004 = vmatprep.subr.mxu0 0.0
        %1005 = vmatpush1.msra.mxu0 0.0
        %1006 = vmatprep.subr.mxu0 0.0
        %1007 = vmatpush1.msra.mxu0 0.0
        %1008 = vmatprep.subr.mxu0 0.0
        %1009 = vmatpush1.msra.mxu0 0.0
        %1010 = vmatprep.subr.mxu0 0.0
        %1011 = vmatpush1.msra.mxu0 0.0
        %1012 = vmatprep.subr.mxu0 0.0
        %1013 = vmatpush1.msra.mxu0 0.0
        %1014 = vmatprep.subr.mxu0 0.0
        %1015 = vmatpush1.msra.mxu0 0.0
        %1016 = vmatprep.subr.mxu0 0.0
        %1017 = vmatpush1.msra.mxu0 0.0
        %1018 = vmatprep.subr.mxu0 0.0
        %1019 = vmatpush1.msra.mxu0 0.0
        %1020 = vmatprep.subr.mxu0 0.0
        %1021 = vmatpush1.msra.mxu0 0.0
        %1022 = vmatprep.subr.mxu0 0.0
        %1023 = vmatpush1.msra.mxu0 0.0
        %1024 = vmatprep.subr.mxu0 0.0
        %1025 = vmatpush1.msra.mxu0 0.0
        %1026 = vmatprep.subr.mxu0 0.0
        %1027 = vmatpush1.msra.mxu0 0.0
        %1028 = vmatprep.subr.mxu0 0.0
        %1029 = vmatpush1.msra.mxu0 0.0
        %1030 = vmatprep.subr.mxu0 0.0
        %1031 = vmatpush1.msra.mxu0 0.0
        %1032 = vmatprep.subr.mxu0 0.0
        %1033 = vmatpush1.msra.mxu0 0.0
        %1034 = vmatprep.subr.mxu0 0.0
        %1035 = vmatpush1.msra.mxu0 0.0
        %1036 = vmatprep.subr.mxu0 0.0
        %1037 = vmatpush1.msra.mxu0 0.0
        %1038 = vmatprep.mubr.f32.mxu0 0.0
        %1039 = vmatmul.mubr.f32.gmra.mrb[0].mxu0 %v972
        %v1040 = vpop.f32.mrb[0].mxu0
        %v1041 = vadd.f32 0.0, %v1040
        %v1042 = vpop.f32.mrb[0].mxu0
        %1043 = vdwg.mxu0
        %1044 = vrot.lane.b32.xlu0 %v868, 116
        %v1045 = vpop.permute.xlu0 %1044
        %1047 = vrot.lane.b32.xlu0 %v666, 124
        %v1048 = vpop.permute.xlu0 %1047
        %v1050 = vsel %vm845, %v1045, %v1048
        %v1051 = vmul.f32 %v666, %v859
        %v1052 = vmul.f32 %v1050, %v566
        %1054 = vrot.lane.b32.xlu0 %v1052, 8
        %v1055 = vpop.permute.xlu0 %1054
        %v1057 = vadd.f32 %v1051, %v1055
        %v1058 = vmul.f32 %v1057, 0.35355338
        %1060 = vrot.lane.b32.xlu0 %v1058, 120
        %v1061 = vpop.permute.xlu0 %1060
        %v1062 = vsel %vm882, %v1061, 0
        %1064 = vmatprep.subr.mxu0 0.0
        %1065 = vmatpush1.xpose.msra.mxu0 %v887
        %1066 = vmatprep.subr.mxu0 0.0
        %1067 = vmatpush1.xpose.msra.mxu0 0.0
        %1068 = vmatprep.subr.mxu0 0.0
        %1069 = vmatpush1.xpose.msra.mxu0 0.0
        %1070 = vmatprep.subr.mxu0 0.0
        %1071 = vmatpush1.xpose.msra.mxu0 0.0
        %1072 = vmatprep.subr.mxu0 0.0
        %1073 = vmatpush1.xpose.msra.mxu0 0.0
        %1074 = vmatprep.subr.mxu0 0.0
        %1075 = vmatpush1.xpose.msra.mxu0 0.0
        %1076 = vmatprep.subr.mxu0 0.0
        %1077 = vmatpush1.xpose.msra.mxu0 0.0
        %1078 = vmatprep.subr.mxu0 0.0
        %1079 = vmatpush1.xpose.msra.mxu0 0.0
        %1080 = vmatprep.subr.mxu0 0.0
        %1081 = vmatpush1.xpose.msra.mxu0 0.0
        %1082 = vmatprep.subr.mxu0 0.0
        %1083 = vmatpush1.xpose.msra.mxu0 0.0
        %1084 = vmatprep.subr.mxu0 0.0
        %1085 = vmatpush1.xpose.msra.mxu0 0.0
        %1086 = vmatprep.subr.mxu0 0.0
        %1087 = vmatpush1.xpose.msra.mxu0 0.0
        %1088 = vmatprep.subr.mxu0 0.0
        %1089 = vmatpush1.xpose.msra.mxu0 0.0
        %1090 = vmatprep.subr.mxu0 0.0
        %1091 = vmatpush1.xpose.msra.mxu0 0.0
        %1092 = vmatprep.subr.mxu0 0.0
        %1093 = vmatpush1.xpose.msra.mxu0 0.0
        %1094 = vmatprep.subr.mxu0 0.0
        %1095 = vmatpush1.xpose.msra.mxu0 0.0
        %1096 = vmatprep.subr.mxu0 0.0
        %1097 = vmatpush1.xpose.msra.mxu0 0.0
        %1098 = vmatprep.subr.mxu0 0.0
        %1099 = vmatpush1.xpose.msra.mxu0 0.0
        %1100 = vmatprep.subr.mxu0 0.0
        %1101 = vmatpush1.xpose.msra.mxu0 0.0
        %1102 = vmatprep.subr.mxu0 0.0
        %1103 = vmatpush1.xpose.msra.mxu0 0.0
        %1104 = vmatprep.subr.mxu0 0.0
        %1105 = vmatpush1.xpose.msra.mxu0 0.0
        %1106 = vmatprep.subr.mxu0 0.0
        %1107 = vmatpush1.xpose.msra.mxu0 0.0
        %1108 = vmatprep.subr.mxu0 0.0
        %1109 = vmatpush1.xpose.msra.mxu0 0.0
        %1110 = vmatprep.subr.mxu0 0.0
        %1111 = vmatpush1.xpose.msra.mxu0 0.0
        %1112 = vmatprep.subr.mxu0 0.0
        %1113 = vmatpush1.xpose.msra.mxu0 0.0
        %1114 = vmatprep.subr.mxu0 0.0
        %1115 = vmatpush1.xpose.msra.mxu0 0.0
        %1116 = vmatprep.subr.mxu0 0.0
        %1117 = vmatpush1.xpose.msra.mxu0 0.0
        %1118 = vmatprep.subr.mxu0 0.0
        %1119 = vmatpush1.xpose.msra.mxu0 0.0
        %1120 = vmatprep.subr.mxu0 0.0
        %1121 = vmatpush1.xpose.msra.mxu0 0.0
        %1122 = vmatprep.subr.mxu0 0.0
        %1123 = vmatpush1.xpose.msra.mxu0 0.0
        %1124 = vmatprep.subr.mxu0 0.0
        %1125 = vmatpush1.xpose.msra.mxu0 0.0
        %1126 = vmatprep.subr.mxu0 0.0
        %1127 = vmatpush1.xpose.msra.mxu0 0.0
        %1128 = vmatprep.mubr.f32.mxu0 0.0
        %1129 = vmatmul.mubr.f32.gmra.mrb[0].mxu0 %v1062
        %v1130 = vpop.f32.mrb[0].mxu0
        %v1131 = vadd.f32 0.0, %v1130
        %v1132 = vpop.f32.mrb[0].mxu0
        %1133 = vdwg.mxu0
        %v1134 = vsel %vm835, %v1131, -1e+30
        %v1135 = vsel %vm882, %v1134, -inf
        %1136 = vmax.xlane.f32.xlu0 %v1135
        %v1137 = vpop.xlane.xlu0 %1136
        %v1138 = vsub.f32 %v1134, %v1137
        %v1139 = vmul.f32 %v1138, 1.442695
        %v1140 = vpow.pop %v1139
        %v1141 = vsel %vm882, %v1140, 0.0
        %1142 = vadd.xlane.f32.xlu0 %v1141
        %v1143 = vpop.xlane.xlu0 %1142
        %v1144 = vrcp.pop %v1143
        %v1145 = vmul.f32 %v1140, %v1144
        %v1147 = vsel %vm882, %v1145, 0
        %1149 = vmatprep.subr.mxu0 0.0
        %1150 = vmatpush1.msra.mxu0 %v828
        %1151 = vmatprep.subr.mxu0 0.0
        %1152 = vmatpush1.msra.mxu0 0.0
        %1153 = vmatprep.subr.mxu0 0.0
        %1154 = vmatpush1.msra.mxu0 0.0
        %1155 = vmatprep.subr.mxu0 0.0
        %1156 = vmatpush1.msra.mxu0 0.0
        %1157 = vmatprep.subr.mxu0 0.0
        %1158 = vmatpush1.msra.mxu0 0.0
        %1159 = vmatprep.subr.mxu0 0.0
        %1160 = vmatpush1.msra.mxu0 0.0
        %1161 = vmatprep.subr.mxu0 0.0
        %1162 = vmatpush1.msra.mxu0 0.0
        %1163 = vmatprep.subr.mxu0 0.0
        %1164 = vmatpush1.msra.mxu0 0.0
        %1165 = vmatprep.subr.mxu0 0.0
        %1166 = vmatpush1.msra.mxu0 0.0
        %1167 = vmatprep.subr.mxu0 0.0
        %1168 = vmatpush1.msra.mxu0 0.0
        %1169 = vmatprep.subr.mxu0 0.0
        %1170 = vmatpush1.msra.mxu0 0.0
        %1171 = vmatprep.subr.mxu0 0.0
        %1172 = vmatpush1.msra.mxu0 0.0
        %1173 = vmatprep.subr.mxu0 0.0
        %1174 = vmatpush1.msra.mxu0 0.0
        %1175 = vmatprep.subr.mxu0 0.0
        %1176 = vmatpush1.msra.mxu0 0.0
        %1177 = vmatprep.subr.mxu0 0.0
        %1178 = vmatpush1.msra.mxu0 0.0
        %1179 = vmatprep.subr.mxu0 0.0
        %1180 = vmatpush1.msra.mxu0 0.0
        %1181 = vmatprep.subr.mxu0 0.0
        %1182 = vmatpush1.msra.mxu0 0.0
        %1183 = vmatprep.subr.mxu0 0.0
        %1184 = vmatpush1.msra.mxu0 0.0
        %1185 = vmatprep.subr.mxu0 0.0
        %1186 = vmatpush1.msra.mxu0 0.0
        %1187 = vmatprep.subr.mxu0 0.0
        %1188 = vmatpush1.msra.mxu0 0.0
        %1189 = vmatprep.subr.mxu0 0.0
        %1190 = vmatpush1.msra.mxu0 0.0
        %1191 = vmatprep.subr.mxu0 0.0
        %1192 = vmatpush1.msra.mxu0 0.0
        %1193 = vmatprep.subr.mxu0 0.0
        %1194 = vmatpush1.msra.mxu0 0.0
        %1195 = vmatprep.subr.mxu0 0.0
        %1196 = vmatpush1.msra.mxu0 0.0
        %1197 = vmatprep.subr.mxu0 0.0
        %1198 = vmatpush1.msra.mxu0 0.0
        %1199 = vmatprep.subr.mxu0 0.0
        %1200 = vmatpush1.msra.mxu0 0.0
        %1201 = vmatprep.subr.mxu0 0.0
        %1202 = vmatpush1.msra.mxu0 0.0
        %1203 = vmatprep.subr.mxu0 0.0
        %1204 = vmatpush1.msra.mxu0 0.0
        %1205 = vmatprep.subr.mxu0 0.0
        %1206 = vmatpush1.msra.mxu0 0.0
        %1207 = vmatprep.subr.mxu0 0.0
        %1208 = vmatpush1.msra.mxu0 0.0
        %1209 = vmatprep.subr.mxu0 0.0
        %1210 = vmatpush1.msra.mxu0 0.0
        %1211 = vmatprep.subr.mxu0 0.0
        %1212 = vmatpush1.msra.mxu0 0.0
        %1213 = vmatprep.mubr.f32.mxu0 0.0
        %1214 = vmatmul.mubr.f32.gmra.mrb[0].mxu0 %v1147
        %v1215 = vpop.f32.mrb[0].mxu0
        %v1216 = vadd.f32 0.0, %v1215
        %v1217 = vpop.f32.mrb[0].mxu0
        %1218 = vdwg.mxu0
        %1219 = vrot.lane.b32.xlu0 %v868, 108
        %v1220 = vpop.permute.xlu0 %1219
        %1222 = vrot.lane.b32.xlu0 %v666, 116
        %v1223 = vpop.permute.xlu0 %1222
        %v1225 = vsel %vm845, %v1220, %v1223
        %1226 = vrot.lane.b32.xlu0 %v565, 16
        %v1227 = vpop.permute.xlu0 %1226
        %v1229 = vmul.f32 %v666, %v1227
        %v1230 = vmul.f32 %v1225, %v566
        %1232 = vrot.lane.b32.xlu0 %v1230, 16
        %v1233 = vpop.permute.xlu0 %1232
        %v1235 = vadd.f32 %v1229, %v1233
        %v1236 = vmul.f32 %v1235, 0.35355338
        %1238 = vrot.lane.b32.xlu0 %v1236, 112
        %v1239 = vpop.permute.xlu0 %1238
        %1241 = vrot.lane.b32.xlu0 %v867, 120
        %v1242 = vpop.permute.xlu0 %1241
        %v1243 = vsel %vm882, %v1239, 0
        %v1245 = vsel %vm882, %v1242, 0
        %1247 = vmatprep.subr.mxu0 0.0
        %1248 = vmatpush1.xpose.msra.mxu0 %v1245
        %1249 = vmatprep.subr.mxu0 0.0
        %1250 = vmatpush1.xpose.msra.mxu0 0.0
        %1251 = vmatprep.subr.mxu0 0.0
        %1252 = vmatpush1.xpose.msra.mxu0 0.0
        %1253 = vmatprep.subr.mxu0 0.0
        %1254 = vmatpush1.xpose.msra.mxu0 0.0
        %1255 = vmatprep.subr.mxu0 0.0
        %1256 = vmatpush1.xpose.msra.mxu0 0.0
        %1257 = vmatprep.subr.mxu0 0.0
        %1258 = vmatpush1.xpose.msra.mxu0 0.0
        %1259 = vmatprep.subr.mxu0 0.0
        %1260 = vmatpush1.xpose.msra.mxu0 0.0
        %1261 = vmatprep.subr.mxu0 0.0
        %1262 = vmatpush1.xpose.msra.mxu0 0.0
        %1263 = vmatprep.subr.mxu0 0.0
        %1264 = vmatpush1.xpose.msra.mxu0 0.0
        %1265 = vmatprep.subr.mxu0 0.0
        %1266 = vmatpush1.xpose.msra.mxu0 0.0
        %1267 = vmatprep.subr.mxu0 0.0
        %1268 = vmatpush1.xpose.msra.mxu0 0.0
        %1269 = vmatprep.subr.mxu0 0.0
        %1270 = vmatpush1.xpose.msra.mxu0 0.0
        %1271 = vmatprep.subr.mxu0 0.0
        %1272 = vmatpush1.xpose.msra.mxu0 0.0
        %1273 = vmatprep.subr.mxu0 0.0
        %1274 = vmatpush1.xpose.msra.mxu0 0.0
        %1275 = vmatprep.subr.mxu0 0.0
        %1276 = vmatpush1.xpose.msra.mxu0 0.0
        %1277 = vmatprep.subr.mxu0 0.0
        %1278 = vmatpush1.xpose.msra.mxu0 0.0
        %1279 = vmatprep.subr.mxu0 0.0
        %1280 = vmatpush1.xpose.msra.mxu0 0.0
        %1281 = vmatprep.subr.mxu0 0.0
        %1282 = vmatpush1.xpose.msra.mxu0 0.0
        %1283 = vmatprep.subr.mxu0 0.0
        %1284 = vmatpush1.xpose.msra.mxu0 0.0
        %1285 = vmatprep.subr.mxu0 0.0
        %1286 = vmatpush1.xpose.msra.mxu0 0.0
        %1287 = vmatprep.subr.mxu0 0.0
        %1288 = vmatpush1.xpose.msra.mxu0 0.0
        %1289 = vmatprep.subr.mxu0 0.0
        %1290 = vmatpush1.xpose.msra.mxu0 0.0
        %1291 = vmatprep.subr.mxu0 0.0
        %1292 = vmatpush1.xpose.msra.mxu0 0.0
        %1293 = vmatprep.subr.mxu0 0.0
        %1294 = vmatpush1.xpose.msra.mxu0 0.0
        %1295 = vmatprep.subr.mxu0 0.0
        %1296 = vmatpush1.xpose.msra.mxu0 0.0
        %1297 = vmatprep.subr.mxu0 0.0
        %1298 = vmatpush1.xpose.msra.mxu0 0.0
        %1299 = vmatprep.subr.mxu0 0.0
        %1300 = vmatpush1.xpose.msra.mxu0 0.0
        %1301 = vmatprep.subr.mxu0 0.0
        %1302 = vmatpush1.xpose.msra.mxu0 0.0
        %1303 = vmatprep.subr.mxu0 0.0
        %1304 = vmatpush1.xpose.msra.mxu0 0.0
        %1305 = vmatprep.subr.mxu0 0.0
        %1306 = vmatpush1.xpose.msra.mxu0 0.0
        %1307 = vmatprep.subr.mxu0 0.0
        %1308 = vmatpush1.xpose.msra.mxu0 0.0
        %1309 = vmatprep.subr.mxu0 0.0
        %1310 = vmatpush1.xpose.msra.mxu0 0.0
        %1311 = vmatprep.mubr.f32.mxu0 0.0
        %1312 = vmatmul.mubr.f32.gmra.mrb[0].mxu0 %v1243
        %v1313 = vpop.f32.mrb[0].mxu0
        %v1314 = vadd.f32 0.0, %v1313
        %v1315 = vpop.f32.mrb[0].mxu0
        %1316 = vdwg.mxu0
        %v1317 = vsel %vm835, %v1314, -1e+30
        %v1318 = vsel %vm882, %v1317, -inf
        %1319 = vmax.xlane.f32.xlu0 %v1318
        %v1320 = vpop.xlane.xlu0 %1319
        %v1321 = vsub.f32 %v1317, %v1320
        %v1322 = vmul.f32 %v1321, 1.442695
        %v1323 = vpow.pop %v1322
        %v1324 = vsel %vm882, %v1323, 0.0
        %1325 = vadd.xlane.f32.xlu0 %v1324
        %v1326 = vpop.xlane.xlu0 %1325
        %v1327 = vrcp.pop %v1326
        %v1328 = vmul.f32 %v1323, %v1327
        %1330 = vrot.lane.b32.xlu0 %v828, 120
        %v1331 = vpop.permute.xlu0 %1330
        %v1334 = vsel %vm882, %v1328, 0
        %1336 = vmatprep.subr.mxu0 0.0
        %1337 = vmatpush1.msra.mxu0 %v1331
        %1338 = vmatprep.subr.mxu0 0.0
        %1339 = vmatpush1.msra.mxu0 0.0
        %1340 = vmatprep.subr.mxu0 0.0
        %1341 = vmatpush1.msra.mxu0 0.0
        %1342 = vmatprep.subr.mxu0 0.0
        %1343 = vmatpush1.msra.mxu0 0.0
        %1344 = vmatprep.subr.mxu0 0.0
        %1345 = vmatpush1.msra.mxu0 0.0
        %1346 = vmatprep.subr.mxu0 0.0
        %1347 = vmatpush1.msra.mxu0 0.0
        %1348 = vmatprep.subr.mxu0 0.0
        %1349 = vmatpush1.msra.mxu0 0.0
        %1350 = vmatprep.subr.mxu0 0.0
        %1351 = vmatpush1.msra.mxu0 0.0
        %1352 = vmatprep.subr.mxu0 0.0
        %1353 = vmatpush1.msra.mxu0 0.0
        %1354 = vmatprep.subr.mxu0 0.0
        %1355 = vmatpush1.msra.mxu0 0.0
        %1356 = vmatprep.subr.mxu0 0.0
        %1357 = vmatpush1.msra.mxu0 0.0
        %1358 = vmatprep.subr.mxu0 0.0
        %1359 = vmatpush1.msra.mxu0 0.0
        %1360 = vmatprep.subr.mxu0 0.0
        %1361 = vmatpush1.msra.mxu0 0.0
        %1362 = vmatprep.subr.mxu0 0.0
        %1363 = vmatpush1.msra.mxu0 0.0
        %1364 = vmatprep.subr.mxu0 0.0
        %1365 = vmatpush1.msra.mxu0 0.0
        %1366 = vmatprep.subr.mxu0 0.0
        %1367 = vmatpush1.msra.mxu0 0.0
        %1368 = vmatprep.subr.mxu0 0.0
        %1369 = vmatpush1.msra.mxu0 0.0
        %1370 = vmatprep.subr.mxu0 0.0
        %1371 = vmatpush1.msra.mxu0 0.0
        %1372 = vmatprep.subr.mxu0 0.0
        %1373 = vmatpush1.msra.mxu0 0.0
        %1374 = vmatprep.subr.mxu0 0.0
        %1375 = vmatpush1.msra.mxu0 0.0
        %1376 = vmatprep.subr.mxu0 0.0
        %1377 = vmatpush1.msra.mxu0 0.0
        %1378 = vmatprep.subr.mxu0 0.0
        %1379 = vmatpush1.msra.mxu0 0.0
        %1380 = vmatprep.subr.mxu0 0.0
        %1381 = vmatpush1.msra.mxu0 0.0
        %1382 = vmatprep.subr.mxu0 0.0
        %1383 = vmatpush1.msra.mxu0 0.0
        %1384 = vmatprep.subr.mxu0 0.0
        %1385 = vmatpush1.msra.mxu0 0.0
        %1386 = vmatprep.subr.mxu0 0.0
        %1387 = vmatpush1.msra.mxu0 0.0
        %1388 = vmatprep.subr.mxu0 0.0
        %1389 = vmatpush1.msra.mxu0 0.0
        %1390 = vmatprep.subr.mxu0 0.0
        %1391 = vmatpush1.msra.mxu0 0.0
        %1392 = vmatprep.subr.mxu0 0.0
        %1393 = vmatpush1.msra.mxu0 0.0
        %1394 = vmatprep.subr.mxu0 0.0
        %1395 = vmatpush1.msra.mxu0 0.0
        %1396 = vmatprep.subr.mxu0 0.0
        %1397 = vmatpush1.msra.mxu0 0.0
        %1398 = vmatprep.subr.mxu0 0.0
        %1399 = vmatpush1.msra.mxu0 0.0
        %1400 = vmatprep.mubr.f32.mxu0 0.0
        %1401 = vmatmul.mubr.f32.gmra.mrb[0].mxu0 %v1334
        %v1402 = vpop.f32.mrb[0].mxu0
        %v1403 = vadd.f32 0.0, %v1402
        %v1404 = vpop.f32.mrb[0].mxu0
        %1405 = vdwg.mxu0
        %1406 = vrot.lane.b32.xlu0 %v868, 100
        %v1407 = vpop.permute.xlu0 %1406
        %1409 = vrot.lane.b32.xlu0 %v666, 108
        %v1410 = vpop.permute.xlu0 %1409
        %v1412 = vsel %vm845, %v1407, %v1410
        %1413 = vrot.lane.b32.xlu0 %v565, 24
        %v1414 = vpop.permute.xlu0 %1413
        %v1416 = vmul.f32 %v666, %v1414
        %v1417 = vmul.f32 %v1412, %v566
        %1419 = vrot.lane.b32.xlu0 %v1417, 24
        %v1420 = vpop.permute.xlu0 %1419
        %v1422 = vadd.f32 %v1416, %v1420
        %v1423 = vmul.f32 %v1422, 0.35355338
        %1425 = vrot.lane.b32.xlu0 %v1423, 104
        %v1426 = vpop.permute.xlu0 %1425
        %v1427 = vsel %vm882, %v1426, 0
        %1429 = vmatprep.subr.mxu0 0.0
        %1430 = vmatpush1.xpose.msra.mxu0 %v1245
        %1431 = vmatprep.subr.mxu0 0.0
        %1432 = vmatpush1.xpose.msra.mxu0 0.0
        %1433 = vmatprep.subr.mxu0 0.0
        %1434 = vmatpush1.xpose.msra.mxu0 0.0
        %1435 = vmatprep.subr.mxu0 0.0
        %1436 = vmatpush1.xpose.msra.mxu0 0.0
        %1437 = vmatprep.subr.mxu0 0.0
        %1438 = vmatpush1.xpose.msra.mxu0 0.0
        %1439 = vmatprep.subr.mxu0 0.0
        %1440 = vmatpush1.xpose.msra.mxu0 0.0
        %1441 = vmatprep.subr.mxu0 0.0
        %1442 = vmatpush1.xpose.msra.mxu0 0.0
        %1443 = vmatprep.subr.mxu0 0.0
        %1444 = vmatpush1.xpose.msra.mxu0 0.0
        %1445 = vmatprep.subr.mxu0 0.0
        %1446 = vmatpush1.xpose.msra.mxu0 0.0
        %1447 = vmatprep.subr.mxu0 0.0
        %1448 = vmatpush1.xpose.msra.mxu0 0.0
        %1449 = vmatprep.subr.mxu0 0.0
        %1450 = vmatpush1.xpose.msra.mxu0 0.0
        %1451 = vmatprep.subr.mxu0 0.0
        %1452 = vmatpush1.xpose.msra.mxu0 0.0
        %1453 = vmatprep.subr.mxu0 0.0
        %1454 = vmatpush1.xpose.msra.mxu0 0.0
        %1455 = vmatprep.subr.mxu0 0.0
        %1456 = vmatpush1.xpose.msra.mxu0 0.0
        %1457 = vmatprep.subr.mxu0 0.0
        %1458 = vmatpush1.xpose.msra.mxu0 0.0
        %1459 = vmatprep.subr.mxu0 0.0
        %1460 = vmatpush1.xpose.msra.mxu0 0.0
        %1461 = vmatprep.subr.mxu0 0.0
        %1462 = vmatpush1.xpose.msra.mxu0 0.0
        %1463 = vmatprep.subr.mxu0 0.0
        %1464 = vmatpush1.xpose.msra.mxu0 0.0
        %1465 = vmatprep.subr.mxu0 0.0
        %1466 = vmatpush1.xpose.msra.mxu0 0.0
        %1467 = vmatprep.subr.mxu0 0.0
        %1468 = vmatpush1.xpose.msra.mxu0 0.0
        %1469 = vmatprep.subr.mxu0 0.0
        %1470 = vmatpush1.xpose.msra.mxu0 0.0
        %1471 = vmatprep.subr.mxu0 0.0
        %1472 = vmatpush1.xpose.msra.mxu0 0.0
        %1473 = vmatprep.subr.mxu0 0.0
        %1474 = vmatpush1.xpose.msra.mxu0 0.0
        %1475 = vmatprep.subr.mxu0 0.0
        %1476 = vmatpush1.xpose.msra.mxu0 0.0
        %1477 = vmatprep.subr.mxu0 0.0
        %1478 = vmatpush1.xpose.msra.mxu0 0.0
        %1479 = vmatprep.subr.mxu0 0.0
        %1480 = vmatpush1.xpose.msra.mxu0 0.0
        %1481 = vmatprep.subr.mxu0 0.0
        %1482 = vmatpush1.xpose.msra.mxu0 0.0
        %1483 = vmatprep.subr.mxu0 0.0
        %1484 = vmatpush1.xpose.msra.mxu0 0.0
        %1485 = vmatprep.subr.mxu0 0.0
        %1486 = vmatpush1.xpose.msra.mxu0 0.0
        %1487 = vmatprep.subr.mxu0 0.0
        %1488 = vmatpush1.xpose.msra.mxu0 0.0
        %1489 = vmatprep.subr.mxu0 0.0
        %1490 = vmatpush1.xpose.msra.mxu0 0.0
        %1491 = vmatprep.subr.mxu0 0.0
        %1492 = vmatpush1.xpose.msra.mxu0 0.0
        %1493 = vmatprep.mubr.f32.mxu0 0.0
        %1494 = vmatmul.mubr.f32.gmra.mrb[0].mxu0 %v1427
        %v1495 = vpop.f32.mrb[0].mxu0
        %v1496 = vadd.f32 0.0, %v1495
        %v1497 = vpop.f32.mrb[0].mxu0
        %1498 = vdwg.mxu0
        %v1499 = vsel %vm835, %v1496, -1e+30
        %v1500 = vsel %vm882, %v1499, -inf
        %1501 = vmax.xlane.f32.xlu0 %v1500
        %v1502 = vpop.xlane.xlu0 %1501
        %v1503 = vsub.f32 %v1499, %v1502
        %v1504 = vmul.f32 %v1503, 1.442695
        %v1505 = vpow.pop %v1504
        %v1506 = vsel %vm882, %v1505, 0.0
        %1507 = vadd.xlane.f32.xlu0 %v1506
        %v1508 = vpop.xlane.xlu0 %1507
        %v1509 = vrcp.pop %v1508
        %v1510 = vmul.f32 %v1505, %v1509
        %v1512 = vsel %vm882, %v1510, 0
        %1514 = vmatprep.subr.mxu0 0.0
        %1515 = vmatpush1.msra.mxu0 %v1331
        %1516 = vmatprep.subr.mxu0 0.0
        %1517 = vmatpush1.msra.mxu0 0.0
        %1518 = vmatprep.subr.mxu0 0.0
        %1519 = vmatpush1.msra.mxu0 0.0
        %1520 = vmatprep.subr.mxu0 0.0
        %1521 = vmatpush1.msra.mxu0 0.0
        %1522 = vmatprep.subr.mxu0 0.0
        %1523 = vmatpush1.msra.mxu0 0.0
        %1524 = vmatprep.subr.mxu0 0.0
        %1525 = vmatpush1.msra.mxu0 0.0
        %1526 = vmatprep.subr.mxu0 0.0
        %1527 = vmatpush1.msra.mxu0 0.0
        %1528 = vmatprep.subr.mxu0 0.0
        %1529 = vmatpush1.msra.mxu0 0.0
        %1530 = vmatprep.subr.mxu0 0.0
        %1531 = vmatpush1.msra.mxu0 0.0
        %1532 = vmatprep.subr.mxu0 0.0
        %1533 = vmatpush1.msra.mxu0 0.0
        %1534 = vmatprep.subr.mxu0 0.0
        %1535 = vmatpush1.msra.mxu0 0.0
        %1536 = vmatprep.subr.mxu0 0.0
        %1537 = vmatpush1.msra.mxu0 0.0
        %1538 = vmatprep.subr.mxu0 0.0
        %1539 = vmatpush1.msra.mxu0 0.0
        %1540 = vmatprep.subr.mxu0 0.0
        %1541 = vmatpush1.msra.mxu0 0.0
        %1542 = vmatprep.subr.mxu0 0.0
        %1543 = vmatpush1.msra.mxu0 0.0
        %1544 = vmatprep.subr.mxu0 0.0
        %1545 = vmatpush1.msra.mxu0 0.0
        %1546 = vmatprep.subr.mxu0 0.0
        %1547 = vmatpush1.msra.mxu0 0.0
        %1548 = vmatprep.subr.mxu0 0.0
        %1549 = vmatpush1.msra.mxu0 0.0
        %1550 = vmatprep.subr.mxu0 0.0
        %1551 = vmatpush1.msra.mxu0 0.0
        %1552 = vmatprep.subr.mxu0 0.0
        %1553 = vmatpush1.msra.mxu0 0.0
        %1554 = vmatprep.subr.mxu0 0.0
        %1555 = vmatpush1.msra.mxu0 0.0
        %1556 = vmatprep.subr.mxu0 0.0
        %1557 = vmatpush1.msra.mxu0 0.0
        %1558 = vmatprep.subr.mxu0 0.0
        %1559 = vmatpush1.msra.mxu0 0.0
        %1560 = vmatprep.subr.mxu0 0.0
        %1561 = vmatpush1.msra.mxu0 0.0
        %1562 = vmatprep.subr.mxu0 0.0
        %1563 = vmatpush1.msra.mxu0 0.0
        %1564 = vmatprep.subr.mxu0 0.0
        %1565 = vmatpush1.msra.mxu0 0.0
        %1566 = vmatprep.subr.mxu0 0.0
        %1567 = vmatpush1.msra.mxu0 0.0
        %1568 = vmatprep.subr.mxu0 0.0
        %1569 = vmatpush1.msra.mxu0 0.0
        %1570 = vmatprep.subr.mxu0 0.0
        %1571 = vmatpush1.msra.mxu0 0.0
        %1572 = vmatprep.subr.mxu0 0.0
        %1573 = vmatpush1.msra.mxu0 0.0
        %1574 = vmatprep.subr.mxu0 0.0
        %1575 = vmatpush1.msra.mxu0 0.0
        %1576 = vmatprep.subr.mxu0 0.0
        %1577 = vmatpush1.msra.mxu0 0.0
        %1578 = vmatprep.mubr.f32.mxu0 0.0
        %1579 = vmatmul.mubr.f32.gmra.mrb[0].mxu0 %v1512
        %v1580 = vpop.f32.mrb[0].mxu0
        %v1581 = vadd.f32 0.0, %v1580
        %v1582 = vpop.f32.mrb[0].mxu0
        %1583 = vdwg.mxu0
        %1585 = vrot.lane.b32.xlu0 %v1216, 8
        %v1586 = vpop.permute.xlu0 %1585
        %1589 = vrot.lane.b32.xlu0 %v1403, 16
        %v1590 = vpop.permute.xlu0 %1589
        %1593 = vrot.lane.b32.xlu0 %v1581, 24
        %v1594 = vpop.permute.xlu0 %1593
        %v1596 = vsel %vm882, %v1041, %v1586
        %vm1597 = vcmask 130048
        %v1598 = vsel %vm1597, %v1596, %v1590
        %vm1599 = vcmask 195584
        %v1600 = vsel %vm1599, %v1598, %v1594
        %v1601 = vld [vmem:[%s10] sm:$0xff]
        %v1602 = vld [vmem:[%s10 + $0x8] sm:$0xff]
        %v1603 = vld [vmem:[%s10 + $0x10] sm:$0xff]
        %v1604 = vld [vmem:[%s10 + $0x18] sm:$0xff]
        %v1606 = vsel %vm569, %v1600, 0
        %1608 = vmatprep.subr.mxu0 0.0
        %1609 = vmatpush1.msra.mxu0 %v1601
        %1610 = vmatprep.subr.mxu0 0.0
        %1611 = vmatpush1.msra.mxu0 %v1602
        %1612 = vmatprep.subr.mxu0 0.0
        %1613 = vmatpush1.msra.mxu0 %v1603
        %1614 = vmatprep.subr.mxu0 0.0
        %1615 = vmatpush1.msra.mxu0 %v1604
        %1616 = vmatprep.subr.mxu0 0.0
        %1617 = vmatpush1.msra.mxu0 0.0
        %1618 = vmatprep.subr.mxu0 0.0
        %1619 = vmatpush1.msra.mxu0 0.0
        %1620 = vmatprep.subr.mxu0 0.0
        %1621 = vmatpush1.msra.mxu0 0.0
        %1622 = vmatprep.subr.mxu0 0.0
        %1623 = vmatpush1.msra.mxu0 0.0
        %1624 = vmatprep.subr.mxu0 0.0
        %1625 = vmatpush1.msra.mxu0 0.0
        %1626 = vmatprep.subr.mxu0 0.0
        %1627 = vmatpush1.msra.mxu0 0.0
        %1628 = vmatprep.subr.mxu0 0.0
        %1629 = vmatpush1.msra.mxu0 0.0
        %1630 = vmatprep.subr.mxu0 0.0
        %1631 = vmatpush1.msra.mxu0 0.0
        %1632 = vmatprep.subr.mxu0 0.0
        %1633 = vmatpush1.msra.mxu0 0.0
        %1634 = vmatprep.subr.mxu0 0.0
        %1635 = vmatpush1.msra.mxu0 0.0
        %1636 = vmatprep.subr.mxu0 0.0
        %1637 = vmatpush1.msra.mxu0 0.0
        %1638 = vmatprep.subr.mxu0 0.0
        %1639 = vmatpush1.msra.mxu0 0.0
        %1640 = vmatprep.subr.mxu0 0.0
        %1641 = vmatpush1.msra.mxu0 0.0
        %1642 = vmatprep.subr.mxu0 0.0
        %1643 = vmatpush1.msra.mxu0 0.0
        %1644 = vmatprep.subr.mxu0 0.0
        %1645 = vmatpush1.msra.mxu0 0.0
        %1646 = vmatprep.subr.mxu0 0.0
        %1647 = vmatpush1.msra.mxu0 0.0
        %1648 = vmatprep.subr.mxu0 0.0
        %1649 = vmatpush1.msra.mxu0 0.0
        %1650 = vmatprep.subr.mxu0 0.0
        %1651 = vmatpush1.msra.mxu0 0.0
        %1652 = vmatprep.subr.mxu0 0.0
        %1653 = vmatpush1.msra.mxu0 0.0
        %1654 = vmatprep.subr.mxu0 0.0
        %1655 = vmatpush1.msra.mxu0 0.0
        %1656 = vmatprep.subr.mxu0 0.0
        %1657 = vmatpush1.msra.mxu0 0.0
        %1658 = vmatprep.subr.mxu0 0.0
        %1659 = vmatpush1.msra.mxu0 0.0
        %1660 = vmatprep.subr.mxu0 0.0
        %1661 = vmatpush1.msra.mxu0 0.0
        %1662 = vmatprep.subr.mxu0 0.0
        %1663 = vmatpush1.msra.mxu0 0.0
        %1664 = vmatprep.subr.mxu0 0.0
        %1665 = vmatpush1.msra.mxu0 0.0
        %1666 = vmatprep.subr.mxu0 0.0
        %1667 = vmatpush1.msra.mxu0 0.0
        %1668 = vmatprep.subr.mxu0 0.0
        %1669 = vmatpush1.msra.mxu0 0.0
        %1670 = vmatprep.subr.mxu0 0.0
        %1671 = vmatpush1.msra.mxu0 0.0
        %1672 = vmatprep.mubr.f32.mxu0 0.0
        %1673 = vmatmul.mubr.f32.gmra.mrb[0].mxu0 %v1606
        %v1674 = vpop.f32.mrb[0].mxu0
        %v1675 = vadd.f32 0.0, %v1674
        %v1676 = vpop.f32.mrb[0].mxu0
        %1677 = vdwg.mxu0
        %v1678 = vadd.f32 %v564, %v1675
        %v1679 = vld [vmem:[%s11] sm:$0x1]
        %v1680 = vmul.f32 %v1678, %v1678
        %v1681 = vsel %vm569, %v1680, 0.0
        %1682 = vadd.xlane.f32.xlu0 %v1681
        %v1683 = vpop.xlane.xlu0 %1682
        %v1684 = vmul.f32 %v1683, %v573
        %v1685 = vadd.f32 %v1684, 1e-06
        %v1686 = vrsqrt.pop %v1685
        %v1687 = vmul.f32 %v1678, %v1686
        %v1689 = vlaneseq
        %v1690 = vshrl.u32 %v1689, 7
        %v1691 = vsub.s32 0, %v1690
        %v1692 = vrot.slane %v1679, %v1691
        %v1694 = vmul.f32 %v1687, %v1692
        %v1695 = vld [vmem:[%s12] sm:$0xff]
        %v1696 = vld [vmem:[%s12 + $0x8] sm:$0xff]
        %v1697 = vld [vmem:[%s12 + $0x10] sm:$0xff]
        %v1698 = vld [vmem:[%s12 + $0x18] sm:$0xff]
        %v1700 = vsel %vm569, %v1694, 0
        %1702 = vmatprep.subr.mxu0 0.0
        %1703 = vmatpush1.msra.mxu0 %v1695
        %1704 = vmatprep.subr.mxu0 0.0
        %1705 = vmatpush1.msra.mxu0 %v1696
        %1706 = vmatprep.subr.mxu0 0.0
        %1707 = vmatpush1.msra.mxu0 %v1697
        %1708 = vmatprep.subr.mxu0 0.0
        %1709 = vmatpush1.msra.mxu0 %v1698
        %1710 = vmatprep.subr.mxu0 0.0
        %1711 = vmatpush1.msra.mxu0 0.0
        %1712 = vmatprep.subr.mxu0 0.0
        %1713 = vmatpush1.msra.mxu0 0.0
        %1714 = vmatprep.subr.mxu0 0.0
        %1715 = vmatpush1.msra.mxu0 0.0
        %1716 = vmatprep.subr.mxu0 0.0
        %1717 = vmatpush1.msra.mxu0 0.0
        %1718 = vmatprep.subr.mxu0 0.0
        %1719 = vmatpush1.msra.mxu0 0.0
        %1720 = vmatprep.subr.mxu0 0.0
        %1721 = vmatpush1.msra.mxu0 0.0
        %1722 = vmatprep.subr.mxu0 0.0
        %1723 = vmatpush1.msra.mxu0 0.0
        %1724 = vmatprep.subr.mxu0 0.0
        %1725 = vmatpush1.msra.mxu0 0.0
        %1726 = vmatprep.subr.mxu0 0.0
        %1727 = vmatpush1.msra.mxu0 0.0
        %1728 = vmatprep.subr.mxu0 0.0
        %1729 = vmatpush1.msra.mxu0 0.0
        %1730 = vmatprep.subr.mxu0 0.0
        %1731 = vmatpush1.msra.mxu0 0.0
        %1732 = vmatprep.subr.mxu0 0.0
        %1733 = vmatpush1.msra.mxu0 0.0
        %1734 = vmatprep.subr.mxu0 0.0
        %1735 = vmatpush1.msra.mxu0 0.0
        %1736 = vmatprep.subr.mxu0 0.0
        %1737 = vmatpush1.msra.mxu0 0.0
        %1738 = vmatprep.subr.mxu0 0.0
        %1739 = vmatpush1.msra.mxu0 0.0
        %1740 = vmatprep.subr.mxu0 0.0
        %1741 = vmatpush1.msra.mxu0 0.0
        %1742 = vmatprep.subr.mxu0 0.0
        %1743 = vmatpush1.msra.mxu0 0.0
        %1744 = vmatprep.subr.mxu0 0.0
        %1745 = vmatpush1.msra.mxu0 0.0
        %1746 = vmatprep.subr.mxu0 0.0
        %1747 = vmatpush1.msra.mxu0 0.0
        %1748 = vmatprep.subr.mxu0 0.0
        %1749 = vmatpush1.msra.mxu0 0.0
        %1750 = vmatprep.subr.mxu0 0.0
        %1751 = vmatpush1.msra.mxu0 0.0
        %1752 = vmatprep.subr.mxu0 0.0
        %1753 = vmatpush1.msra.mxu0 0.0
        %1754 = vmatprep.subr.mxu0 0.0
        %1755 = vmatpush1.msra.mxu0 0.0
        %1756 = vmatprep.subr.mxu0 0.0
        %1757 = vmatpush1.msra.mxu0 0.0
        %1758 = vmatprep.subr.mxu0 0.0
        %1759 = vmatpush1.msra.mxu0 0.0
        %1760 = vmatprep.subr.mxu0 0.0
        %1761 = vmatpush1.msra.mxu0 0.0
        %1762 = vmatprep.subr.mxu0 0.0
        %1763 = vmatpush1.msra.mxu0 0.0
        %1764 = vmatprep.subr.mxu0 0.0
        %1765 = vmatpush1.msra.mxu0 0.0
        %1766 = vmatprep.mubr.f32.mxu0 0.0
        %1767 = vmatmul.mubr.f32.gmra.mrb[0].mxu0 %v1700
        %v1768 = vpop.f32.mrb[0].mxu0
        %v1769 = vadd.f32 0.0, %v1768
        %v1770 = vpop.f32.mrb[0].mxu0
        %1771 = vdwg.mxu0
        %v1772 = vld [vmem:[%s13] sm:$0xff]
        %v1773 = vld [vmem:[%s13 + $0x8] sm:$0xff]
        %v1774 = vld [vmem:[%s13 + $0x10] sm:$0xff]
        %v1775 = vld [vmem:[%s13 + $0x18] sm:$0xff]
        %1776 = vmatprep.subr.mxu0 0.0
        %1777 = vmatpush1.msra.mxu0 %v1772
        %1778 = vmatprep.subr.mxu0 0.0
        %1779 = vmatpush1.msra.mxu0 %v1773
        %1780 = vmatprep.subr.mxu0 0.0
        %1781 = vmatpush1.msra.mxu0 %v1774
        %1782 = vmatprep.subr.mxu0 0.0
        %1783 = vmatpush1.msra.mxu0 %v1775
        %1784 = vmatprep.subr.mxu0 0.0
        %1785 = vmatpush1.msra.mxu0 0.0
        %1786 = vmatprep.subr.mxu0 0.0
        %1787 = vmatpush1.msra.mxu0 0.0
        %1788 = vmatprep.subr.mxu0 0.0
        %1789 = vmatpush1.msra.mxu0 0.0
        %1790 = vmatprep.subr.mxu0 0.0
        %1791 = vmatpush1.msra.mxu0 0.0
        %1792 = vmatprep.subr.mxu0 0.0
        %1793 = vmatpush1.msra.mxu0 0.0
        %1794 = vmatprep.subr.mxu0 0.0
        %1795 = vmatpush1.msra.mxu0 0.0
        %1796 = vmatprep.subr.mxu0 0.0
        %1797 = vmatpush1.msra.mxu0 0.0
        %1798 = vmatprep.subr.mxu0 0.0
        %1799 = vmatpush1.msra.mxu0 0.0
        %1800 = vmatprep.subr.mxu0 0.0
        %1801 = vmatpush1.msra.mxu0 0.0
        %1802 = vmatprep.subr.mxu0 0.0
        %1803 = vmatpush1.msra.mxu0 0.0
        %1804 = vmatprep.subr.mxu0 0.0
        %1805 = vmatpush1.msra.mxu0 0.0
        %1806 = vmatprep.subr.mxu0 0.0
        %1807 = vmatpush1.msra.mxu0 0.0
        %1808 = vmatprep.subr.mxu0 0.0
        %1809 = vmatpush1.msra.mxu0 0.0
        %1810 = vmatprep.subr.mxu0 0.0
        %1811 = vmatpush1.msra.mxu0 0.0
        %1812 = vmatprep.subr.mxu0 0.0
        %1813 = vmatpush1.msra.mxu0 0.0
        %1814 = vmatprep.subr.mxu0 0.0
        %1815 = vmatpush1.msra.mxu0 0.0
        %1816 = vmatprep.subr.mxu0 0.0
        %1817 = vmatpush1.msra.mxu0 0.0
        %1818 = vmatprep.subr.mxu0 0.0
        %1819 = vmatpush1.msra.mxu0 0.0
        %1820 = vmatprep.subr.mxu0 0.0
        %1821 = vmatpush1.msra.mxu0 0.0
        %1822 = vmatprep.subr.mxu0 0.0
        %1823 = vmatpush1.msra.mxu0 0.0
        %1824 = vmatprep.subr.mxu0 0.0
        %1825 = vmatpush1.msra.mxu0 0.0
        %1826 = vmatprep.subr.mxu0 0.0
        %1827 = vmatpush1.msra.mxu0 0.0
        %1828 = vmatprep.subr.mxu0 0.0
        %1829 = vmatpush1.msra.mxu0 0.0
        %1830 = vmatprep.subr.mxu0 0.0
        %1831 = vmatpush1.msra.mxu0 0.0
        %1832 = vmatprep.subr.mxu0 0.0
        %1833 = vmatpush1.msra.mxu0 0.0
        %1834 = vmatprep.subr.mxu0 0.0
        %1835 = vmatpush1.msra.mxu0 0.0
        %1836 = vmatprep.subr.mxu0 0.0
        %1837 = vmatpush1.msra.mxu0 0.0
        %1838 = vmatprep.subr.mxu0 0.0
        %1839 = vmatpush1.msra.mxu0 0.0
        %1840 = vmatprep.mubr.f32.mxu0 0.0
        %1841 = vmatmul.mubr.f32.gmra.mrb[0].mxu0 %v1700
        %v1842 = vpop.f32.mrb[0].mxu0
        %v1843 = vadd.f32 0.0, %v1842
        %v1844 = vpop.f32.mrb[0].mxu0
        %1845 = vdwg.mxu0
        %v1846 = vxor.u32 %v1769, 2147483648
        %v1847 = vmul.f32 %v1846, 1.442695
        %v1848 = vpow.pop %v1847
        %v1849 = vadd.f32 %v1848, 1.0
        %v1850 = vrcp.pop %v1849
        %v1851 = vmul.f32 1.0, %v1850
        %v1852 = vmul.f32 %v1769, %v1851
        %v1853 = vmul.f32 %v1852, %v1843
        %v1854 = vld [vmem:[%s14] sm:$0xff]
        %v1855 = vld [vmem:[%s14 + $0x8] sm:$0xff]
        %v1856 = vld [vmem:[%s14 + $0x10] sm:$0xff]
        %v1857 = vld [vmem:[%s14 + $0x18] sm:$0xff]
        %v1858 = vld [vmem:[%s14 + $0x20] sm:$0xff]
        %v1859 = vld [vmem:[%s14 + $0x28] sm:$0xff]
        %v1860 = vld [vmem:[%s14 + $0x30] sm:$0xff]
        %v1861 = vld [vmem:[%s14 + $0x38] sm:$0xff]
        %vm1862 = vcmask 523264
        %v1864 = vsel %vm1862, %v1853, 0
        %1866 = vmatprep.subr.mxu0 0.0
        %1867 = vmatpush1.msra.mxu0 %v1854
        %1868 = vmatprep.subr.mxu0 0.0
        %1869 = vmatpush1.msra.mxu0 %v1855
        %1870 = vmatprep.subr.mxu0 0.0
        %1871 = vmatpush1.msra.mxu0 %v1856
        %1872 = vmatprep.subr.mxu0 0.0
        %1873 = vmatpush1.msra.mxu0 %v1857
        %1874 = vmatprep.subr.mxu0 0.0
        %1875 = vmatpush1.msra.mxu0 %v1858
        %1876 = vmatprep.subr.mxu0 0.0
        %1877 = vmatpush1.msra.mxu0 %v1859
        %1878 = vmatprep.subr.mxu0 0.0
        %1879 = vmatpush1.msra.mxu0 %v1860
        %1880 = vmatprep.subr.mxu0 0.0
        %1881 = vmatpush1.msra.mxu0 %v1861
        %1882 = vmatprep.subr.mxu0 0.0
        %1883 = vmatpush1.msra.mxu0 0.0
        %1884 = vmatprep.subr.mxu0 0.0
        %1885 = vmatpush1.msra.mxu0 0.0
        %1886 = vmatprep.subr.mxu0 0.0
        %1887 = vmatpush1.msra.mxu0 0.0
        %1888 = vmatprep.subr.mxu0 0.0
        %1889 = vmatpush1.msra.mxu0 0.0
        %1890 = vmatprep.subr.mxu0 0.0
        %1891 = vmatpush1.msra.mxu0 0.0
        %1892 = vmatprep.subr.mxu0 0.0
        %1893 = vmatpush1.msra.mxu0 0.0
        %1894 = vmatprep.subr.mxu0 0.0
        %1895 = vmatpush1.msra.mxu0 0.0
        %1896 = vmatprep.subr.mxu0 0.0
        %1897 = vmatpush1.msra.mxu0 0.0
        %1898 = vmatprep.subr.mxu0 0.0
        %1899 = vmatpush1.msra.mxu0 0.0
        %1900 = vmatprep.subr.mxu0 0.0
        %1901 = vmatpush1.msra.mxu0 0.0
        %1902 = vmatprep.subr.mxu0 0.0
        %1903 = vmatpush1.msra.mxu0 0.0
        %1904 = vmatprep.subr.mxu0 0.0
        %1905 = vmatpush1.msra.mxu0 0.0
        %1906 = vmatprep.subr.mxu0 0.0
        %1907 = vmatpush1.msra.mxu0 0.0
        %1908 = vmatprep.subr.mxu0 0.0
        %1909 = vmatpush1.msra.mxu0 0.0
        %1910 = vmatprep.subr.mxu0 0.0
        %1911 = vmatpush1.msra.mxu0 0.0
        %1912 = vmatprep.subr.mxu0 0.0
        %1913 = vmatpush1.msra.mxu0 0.0
        %1914 = vmatprep.subr.mxu0 0.0
        %1915 = vmatpush1.msra.mxu0 0.0
        %1916 = vmatprep.subr.mxu0 0.0
        %1917 = vmatpush1.msra.mxu0 0.0
        %1918 = vmatprep.subr.mxu0 0.0
        %1919 = vmatpush1.msra.mxu0 0.0
        %1920 = vmatprep.subr.mxu0 0.0
        %1921 = vmatpush1.msra.mxu0 0.0
        %1922 = vmatprep.subr.mxu0 0.0
        %1923 = vmatpush1.msra.mxu0 0.0
        %1924 = vmatprep.subr.mxu0 0.0
        %1925 = vmatpush1.msra.mxu0 0.0
        %1926 = vmatprep.subr.mxu0 0.0
        %1927 = vmatpush1.msra.mxu0 0.0
        %1928 = vmatprep.subr.mxu0 0.0
        %1929 = vmatpush1.msra.mxu0 0.0
        %1930 = vmatprep.mubr.f32.mxu0 0.0
        %1931 = vmatmul.mubr.f32.gmra.mrb[0].mxu0 %v1864
        %v1932 = vpop.f32.mrb[0].mxu0
        %v1933 = vadd.f32 0.0, %v1932
        %v1934 = vpop.f32.mrb[0].mxu0
        %1935 = vdwg.mxu0
        %v1936 = vadd.f32 %v1678, %v1933
        %1937 = vst.msk [vmem:[%s559] sm:$0xff] %vm569, %v1936
        %s1938 = sand.u32 %s373, 1
        %s1939 = scalar_lea.sflag [#allocation4], %s1938
        %s1940 = sand.u32 %s373, 1
        %s1941 = smul.addr %s1940, 8
        %s1942 = scalar_lea.vmem [#allocation7], %s1941
        // Predicated region
        $region89: #{tpu_custom_call.1} parent=79 // pred_check
          %p1943 = pneg %p383
        $region90: #{tpu_custom_call.1} parent=79 // pred_check_branch
          %1945 = sbr.rel (%p1943) target = $region92
        $region91: #{tpu_custom_call.1} parent=79 // pred_region
          %s1947 = ssub.s32 128, 128
          %1948 = vsyncadd %s1939, %s1947
          %s1949 = smul.addr %s35, 128
          %s1950 = scalar_lea.hbm %s15, %s1949
          %s1952 = sshll.u32 %s1942, 4
          %s1953 = int_to_ptr.vmem [resolvable:$true] %s1952
          %1955 = dma.vmem_to_hbm [thread:$0]  %s1953, 128, %s1950, %s1939
        $region92: #{tpu_custom_call.1} parent=79 // pred_fallthru
          _
      $region80: #{tpu_custom_call.1} parent=5 // pred_fallthru
        _
      %p1956 = scmp.le.s32.totalorder 2, %s30
      // Predicated region
      $region93: #{tpu_custom_call.1} parent=5 // pred_check
        %p1957 = pneg %p1956
      $region94: #{tpu_custom_call.1} parent=5 // pred_check_branch
        %1959 = sbr.rel (%p1957) target = $region96
      $region95: #{tpu_custom_call.1} parent=5 // pred_region
        %s1960 = ssub.s32 %s30, 2
        // Predicated region
        $region97: #{tpu_custom_call.1} parent=95 // pred_check
          %p1961 = pneg %p389
        $region98: #{tpu_custom_call.1} parent=95 // pred_check_branch
          %1963 = sbr.rel (%p1961) target = $region100
        $region99: #{tpu_custom_call.1} parent=95 // pred_region
          %s1964 = sand.u32 %s374, 1
          %s1965 = scalar_lea.sflag [#allocation4], %s1964
          %s1966 = sand.u32 %s374, 1
          %s1967 = smul.addr %s1966, 8
          %s1968 = scalar_lea.vmem [#allocation7], %s1967
          %1969 = dma.done %s1965, 128
        $region100: #{tpu_custom_call.1} parent=95 // pred_fallthru
          _
      $region96: #{tpu_custom_call.1} parent=5 // pred_fallthru
        _
    $region6: #{tpu_custom_call.1} parent=1 // loop_footer
      %s34 = sadd.s32 1, %s30
    $region7: #{tpu_custom_call.1} parent=1 // loop_footer_branch
      %29 = sbr.rel target = $region3
    $region8: #{tpu_custom_call.1} parent=1 // loop_exit
      _
    %1970 = vsyncpa [#allocation3], 1
    %s1971 = scalar_lea.sflag [#allocation3], 1
    %1972 = vsyncpa %s1971, 1
    %1973 = vsyncpa [#allocation6], 1
    %s1974 = scalar_lea.sflag [#allocation6], 1
    %1975 = vsyncpa %s1974, 1
    %1976 = vsyncpa [#allocation4], 1
    %s1977 = scalar_lea.sflag [#allocation4], 1
    %1978 = vsyncpa %s1977, 1

</llo_original>
